<compile_context>
chip_gen: v6e
topology: v6e:2x2x1
jax: 0.10.0
libtpu: 0.0.40
codegen_flags: <defaults>
</compile_context>

<pallas_src>
import numpy as np
import jax
import jax.numpy as jnp
from jax.experimental import pallas as pl
from jax.experimental.pallas import tpu as pltpu

LANE = 128                     # gate-slab width (>= hid_dim), one lane tile per gate
GATE_ORDER = (0, 1, 3, 2)      # dest slab -> PyTorch gate index: slabs = (i, f, o, g)


# ---------------------------------------------------------------------------
# Fused kernel: input projection + LSTM recurrence + folded head.
# Single invocation (no grid); everything resident in VMEM.
# ---------------------------------------------------------------------------
def lstmg1_fused_kernel(embeds_ref, wih_ref, whh_ref, b_ref, extra_ref,
                        w_ext_ref, b_ext_ref, w_x_ref, w_c2_ref, b_all_ref,
                        out_ref, gates_scr):
    T, B, E = embeds_ref.shape
    HP4 = wih_ref.shape[1]
    HP = HP4 // 4

    # (1) Hoisted input projection: ONE (T*B, E) x (E, 4*HP) MXU matmul.
    x_all = embeds_ref[...].reshape(T * B, E)
    gates_scr[...] = (
        jnp.dot(x_all, wih_ref[...], preferred_element_type=jnp.float32)
        + b_ref[...]
    ).reshape(T, B, HP4)

    # (2) Serial recurrence; per-step work is only (B,HP)x(HP,4HP) + VPU/EUP.
    #     W_hh is re-loaded from VMEM each step (no 64-vreg loop-carried value)
    #     and gate slices land on 128-lane slab boundaries -> free static views.
    def step(t, carry):
        h, c = carry
        g = gates_scr[t] + jnp.dot(h, whh_ref[...],
                                   preferred_element_type=jnp.float32)
        sig = jax.nn.sigmoid(g[:, 0:3 * HP])          # i, f, o slabs: one EUP pass
        i_g = sig[:, 0 * HP:1 * HP]
        f_g = sig[:, 1 * HP:2 * HP]
        o_g = sig[:, 2 * HP:3 * HP]
        g_g = jnp.tanh(g[:, 3 * HP:4 * HP])
        c = f_g * c + i_g * g_g
        h = o_g * jnp.tanh(c)
        return (h, c)

    zero = jnp.zeros((B, HP), jnp.float32)
    h_T, _ = jax.lax.fori_loop(0, T, step, (zero, zero), unroll=min(T, 8))

    # (3) Folded head: BN(eval)+hid_out+combined_out(x-half) were pre-folded at
    #     pack time into w_x / b_all, so only relu(extra_fc) + 2 matmuls remain.
    x_ext = jnp.maximum(
        jnp.dot(extra_ref[...], w_ext_ref[...],
                preferred_element_type=jnp.float32) + b_ext_ref[...], 0.0)
    out = (jnp.dot(h_T, w_x_ref[...], preferred_element_type=jnp.float32)
           + jnp.dot(x_ext, w_c2_ref[...], preferred_element_type=jnp.float32)
           + b_all_ref[...])
    out_ref[...] = out.astype(out_ref.dtype)


def lstmg1_forward(inputs, extra_feats, kp):
    """inputs: (B, T) int32 token ids; extra_feats: (B, F) f32."""
    B, T = inputs.shape
    # Time-major embedding gather directly (transpose the cheap int indices,
    # not the f32 activation tensor).
    emb_tbe = jnp.take(kp["emb"], inputs.T, axis=0)          # (T, B, E)

    # Pad batch to a multiple of 8 sublanes (padded rows are sliced off).
    pad_b = (-B) % 8
    if pad_b:
        emb_tbe = jnp.pad(emb_tbe, ((0, 0), (0, pad_b), (0, 0)))
        extra_feats = jnp.pad(extra_feats, ((0, pad_b), (0, 0)))
    Bp = B + pad_b

    HP4 = kp["wih_p"].shape[1]
    n_classes = kp["w_x_p"].shape[1]

    args = (emb_tbe, kp["wih_p"], kp["whh_p"], kp["b_p"], extra_feats,
            kp["w_ext_p"], kp["b_ext"], kp["w_x_p"], kp["w_c2_p"], kp["b_all"])
    vmem = pl.BlockSpec(memory_space=pltpu.MemorySpace.VMEM)

    # Explicit VMEM budget (keeps us honest on v7x's 64 MiB physical VMEM).
    scratch_bytes = T * Bp * HP4 * 4
    arg_bytes = sum(int(np.prod(a.shape)) * a.dtype.itemsize for a in args)
    out_bytes = Bp * n_classes * 4
    vmem_limit = int(min(max(2 * (arg_bytes + scratch_bytes + out_bytes)
                             + (2 << 20), 16 << 20), 48 << 20))

    out = pl.pallas_call(
        lstmg1_fused_kernel,
        out_shape=jax.ShapeDtypeStruct((Bp, n_classes), jnp.float32),
        in_specs=[vmem] * len(args),
        out_specs=vmem,
        scratch_shapes=[pltpu.VMEM((T, Bp, HP4), jnp.float32)],  # gate buffer
        compiler_params=pltpu.CompilerParams(vmem_limit_bytes=vmem_limit),
    )(*args)
    return out[:B]


# ---------------------------------------------------------------------------
# Parameter packing:
#   * lane-align the 4-gate layout (each gate -> own 128-lane slab, slab order
#     i, f, o, g) and zero-pad hidden-sized tensors to HP=128;
#   * fold BatchNorm(eval) + hid_out + the x-half of combined_out into ONE
#     (HP, n_classes) matrix + a single bias (pure affine chain before relu).
# Padded lanes of h/c stay exactly 0 through the recurrence (see header note),
# so the packed computation is exact.
# ---------------------------------------------------------------------------
def pack_kernel_params(p, lane=LANE):
    hp = jax.lax.Precision.HIGHEST
    H = p["w_hh_t"].shape[0]
    HP = ((H + lane - 1) // lane) * lane

    def pad_gates(w):  # (K, 4H) -> (K, 4*HP); dest slab s holds PyTorch gate GATE_ORDER[s]
        K = w.shape[0]
        out = jnp.zeros((K, 4 * HP), jnp.float32)
        for dst, src in enumerate(GATE_ORDER):
            out = out.at[:, dst * HP:dst * HP + H].set(w[:, src * H:(src + 1) * H])
        return out

    def pad_cols(x, n):
        return jnp.pad(x, [(0, 0)] * (x.ndim - 1) + [(0, n - x.shape[-1])])

    def pad_rows(x, n):
        return jnp.pad(x, [(0, n - x.shape[0])] + [(0, 0)] * (x.ndim - 1))

    # Fold BN(eval) + hid_out + combined_out's x-half:
    #   out_x = hT @ (diag(scale) @ W_hid @ W_c1) + (shift @ W_hid @ W_c1
    #                                                + b_hid @ W_c1 + b_c)
    scale = p["bn_gamma"] / jnp.sqrt(p["bn_var"] + 1e-5)              # (1, H)
    shift = p["bn_beta"] - p["bn_mean"] * scale                       # (1, H)
    w_hid_c1 = jnp.dot(p["w_hid_t"], p["w_c1_t"], precision=hp)       # (H, nc)
    w_x = scale.reshape(-1, 1) * w_hid_c1                             # (H, nc)
    b_all = (jnp.dot(shift, w_hid_c1, precision=hp)
             + jnp.dot(p["b_hid"], p["w_c1_t"], precision=hp)
             + p["b_c"])                                              # (1, nc)

    return {
        "emb": p["emb"],
        # Full 512-column slab layout kept for wih (accepted: extra zero cols
        # cost one-time DMA only; avoids lane-unaligned scatter in-kernel).
        "wih_p": pad_gates(p["w_ih_t"]),                               # (E, 4HP)
        "whh_p": pad_rows(pad_gates(p["w_hh_t"]), HP),                 # (HP, 4HP)
        "b_p": pad_gates(p["b_lstm"]),                                 # (1, 4HP)
        "w_ext_p": pad_cols(p["w_ext_t"], HP),                         # (F, HP)
        "b_ext": pad_cols(p["b_ext"], HP),                             # (1, HP)
        "w_x_p": pad_rows(w_x, HP),                                    # (HP, nc)
        "w_c2_p": pad_rows(p["w_c2_t"], HP),                           # (HP, nc)
        "b_all": b_all,                                                # (1, nc)
    }


# ---------------------------------------------------------------------------
# Pure-JAX reference (unpadded params) for correctness checking.
# ---------------------------------------------------------------------------
def lstmg1_reference(inputs, extra_feats, p):
    hp = jax.lax.Precision.HIGHEST
    embeds = jnp.take(p["emb"], inputs, axis=0)            # (B, T, E)
    B = inputs.shape[0]
    H = p["w_hh_t"].shape[0]

    def step(carry, x_t):
        h, c = carry
        gates = (jnp.dot(x_t, p["w_ih_t"], precision=hp)
                 + jnp.dot(h, p["w_hh_t"], precision=hp) + p["b_lstm"])
        i, f, g, o = jnp.split(gates, 4, axis=-1)
        c = jax.nn.sigmoid(f) * c + jax.nn.sigmoid(i) * jnp.tanh(g)
        h = jax.nn.sigmoid(o) * jnp.tanh(c)
        return (h, c), None

    (hT, _), _ = jax.lax.scan(step,
                              (jnp.zeros((B, H), jnp.float32),
                               jnp.zeros((B, H), jnp.float32)),
                              jnp.transpose(embeds, (1, 0, 2)))
    x = (hT - p["bn_mean"]) / jnp.sqrt(p["bn_var"] + 1e-5) * p["bn_gamma"] + p["bn_beta"]
    x_cls = jnp.dot(x, p["w_hid_t"], precision=hp) + p["b_hid"]
    x_ext = jnp.maximum(jnp.dot(extra_feats, p["w_ext_t"], precision=hp) + p["b_ext"], 0.0)
    xc = jnp.concatenate([x_cls, x_ext], axis=1)
    w_c_t = jnp.concatenate([p["w_c1_t"], p["w_c2_t"]], axis=0)
    return jnp.dot(xc, w_c_t, precision=hp) + p["b_c"]


# ---------------------------------------------------------------------------
def make_params(key, vocab_size, embedding_dim, hid_dim, n_classes, extra_feat_dim):
    ks = jax.random.split(key, 12)
    s = 1.0 / np.sqrt(hid_dim)
    u = lambda k, shape, sc: jax.random.uniform(k, shape, jnp.float32, -sc, sc)

    emb = jax.random.normal(ks[0], (vocab_size, embedding_dim), jnp.float32) * 0.1
    # nn.LSTM layer-0 forward weights (PyTorch gate order i, f, g, o).
    w_ih = u(ks[1], (4 * hid_dim, embedding_dim), s)
    w_hh = u(ks[2], (4 * hid_dim, hid_dim), s)
    b_ih = u(ks[3], (4 * hid_dim,), s)
    b_hh = u(ks[4], (4 * hid_dim,), s)
    # hid_out: Linear(hid_dim, n_classes)
    w_hid = u(ks[5], (n_classes, hid_dim), 1.0 / np.sqrt(hid_dim))
    b_hid = u(ks[6], (n_classes,), 1.0 / np.sqrt(hid_dim))
    # extra_fc: Linear(extra_feat_dim, hid_dim)
    w_ext = u(ks[7], (hid_dim, extra_feat_dim), 1.0 / np.sqrt(extra_feat_dim))
    b_ext = u(ks[8], (hid_dim,), 1.0 / np.sqrt(extra_feat_dim))
    # combined_out: Linear(n_classes + hid_dim = 60, n_classes)
    comb_in = n_classes + hid_dim
    w_c = u(ks[9], (n_classes, comb_in), 1.0 / np.sqrt(comb_in))
    b_c = u(ks[10], (n_classes,), 1.0 / np.sqrt(comb_in))
    w_c_t = w_c.T                                          # (60, n_classes)

    return {
        "emb": emb,
        "w_ih_t": w_ih.T,                                  # (E, 4H)
        "w_hh_t": w_hh.T,                                  # (H, 4H)
        "b_lstm": (b_ih + b_hh)[None, :],                  # (1, 4H)
        # BatchNorm1d eval-mode params (PyTorch defaults).
        "bn_gamma": jnp.ones((1, hid_dim), jnp.float32),
        "bn_beta": jnp.zeros((1, hid_dim), jnp.float32),
        "bn_mean": jnp.zeros((1, hid_dim), jnp.float32),
        "bn_var": jnp.ones((1, hid_dim), jnp.float32),
        "w_hid_t": w_hid.T,                                # (H, n_classes)
        "b_hid": b_hid[None, :],
        "w_ext_t": w_ext.T,                                # (extra, H)
        "b_ext": b_ext[None, :],
        "w_c1_t": w_c_t[:n_classes],                       # (n_classes, n_classes)
        "w_c2_t": w_c_t[n_classes:],                       # (H, n_classes)
        "b_c": b_c[None, :],
    }


if __name__ == "__main__":
    # Small, module-consistent shapes.  B=8 keeps the batch sublane-aligned.
    B, T = 8, 8
    vocab_size, embedding_dim = 128, 300
    hid_dim, n_classes, extra_feat_dim = 50, 10, 10   # 10 + 50 == 60 (combined_out in-dim)

    key = jax.random.PRNGKey(0)
    k_p, k_in, k_ex = jax.random.split(key, 3)
    params = make_params(k_p, vocab_size, embedding_dim, hid_dim, n_classes, extra_feat_dim)
    kparams = pack_kernel_params(params)

    inputs = jax.random.randint(k_in, (B, T), 0, vocab_size, dtype=jnp.int32)
    extra_feats = jax.random.normal(k_ex, (B, extra_feat_dim), jnp.float32)

    # TODO(synk): dropout is stochastic (identity here, eval mode); layer-1 and
    # backward-direction LSTM weights are omitted since h_n[0] never sees them.
    out = jax.block_until_ready(lstmg1_forward(inputs, extra_feats, kparams))
    ref = jax.block_until_ready(lstmg1_reference(inputs, extra_feats, params))

    assert out.shape == (B, n_classes) and out.dtype == jnp.float32
    np.testing.assert_allclose(np.asarray(out), np.asarray(ref), rtol=1e-3, atol=1e-3)
    print("KERNEL_OK")
</pallas_src>

<mosaic_0001>
module attributes {stable_mosaic.version = 11 : i64} {
  func.func @lstmg1_fused_kernel(%arg0: memref<8x8x300xf32, #tpu.memory_space<vmem>>, %arg1: memref<300x512xf32, #tpu.memory_space<vmem>>, %arg2: memref<128x512xf32, #tpu.memory_space<vmem>>, %arg3: memref<1x512xf32, #tpu.memory_space<vmem>>, %arg4: memref<8x10xf32, #tpu.memory_space<vmem>>, %arg5: memref<10x128xf32, #tpu.memory_space<vmem>>, %arg6: memref<1x128xf32, #tpu.memory_space<vmem>>, %arg7: memref<128x10xf32, #tpu.memory_space<vmem>>, %arg8: memref<128x10xf32, #tpu.memory_space<vmem>>, %arg9: memref<1x10xf32, #tpu.memory_space<vmem>>, %arg10: memref<8x10xf32, #tpu.memory_space<vmem>>, %arg11: memref<8x8x512xf32, #tpu.memory_space<vmem>>) attributes {dimension_semantics = [], scalar_prefetch = 0 : i64, scratch_operands = 1 : i64, tpu.core_type = #tpu.core_type<tc>} {
    %c0 = arith.constant 0 : index
    %c0_0 = arith.constant 0 : index
    %c0_1 = arith.constant 0 : index
    %0 = vector.load %arg0[%c0, %c0_0, %c0_1] : memref<8x8x300xf32, #tpu.memory_space<vmem>>, vector<8x8x300xf32>
    %1 = vector.shape_cast %0 : vector<8x8x300xf32> to vector<64x300xf32>
    %c0_2 = arith.constant 0 : index
    %c0_3 = arith.constant 0 : index
    %2 = vector.load %arg1[%c0_2, %c0_3] : memref<300x512xf32, #tpu.memory_space<vmem>>, vector<300x512xf32>
    %cst = arith.constant dense<0.000000e+00> : vector<64x512xf32>
    %3 = tpu.matmul %1, %2, %cst {dimension_numbers = #tpu.dot_dimension_numbers<[1], [0], [0], [1], [0, 0, 1, 1], [], []>} : vector<64x300xf32>, vector<300x512xf32>, vector<64x512xf32> -> vector<64x512xf32>
    %c0_4 = arith.constant 0 : index
    %c0_5 = arith.constant 0 : index
    %4 = vector.load %arg3[%c0_4, %c0_5] : memref<1x512xf32, #tpu.memory_space<vmem>>, vector<1x512xf32>
    %5 = vector.broadcast %4 : vector<1x512xf32> to vector<64x512xf32>
    %6 = arith.addf %3, %5 : vector<64x512xf32>
    %7 = vector.shape_cast %6 : vector<64x512xf32> to vector<8x8x512xf32>
    %c0_6 = arith.constant 0 : index
    %c0_7 = arith.constant 0 : index
    %c0_8 = arith.constant 0 : index
    %8 = vector.load %arg11[%c0_6, %c0_7, %c0_8] : memref<8x8x512xf32, #tpu.memory_space<vmem>>, vector<8x8x512xf32>
    tpu.vector_store %arg11[%c0_6, %c0_7, %c0_8], %7 {strides = array<i32>} : memref<8x8x512xf32, #tpu.memory_space<vmem>>, vector<8x8x512xf32>,
    %cst_9 = arith.constant 0.000000e+00 : f32
    %9 = vector.broadcast %cst_9 : f32 to vector<8x128xf32>
    %c0_i32 = arith.constant 0 : i32
    %10 = arith.index_cast %c0_i32 : i32 to index
    %c0_10 = arith.constant 0 : index
    %c0_11 = arith.constant 0 : index
    %11 = vector.load %arg11[%10, %c0_10, %c0_11] : memref<8x8x512xf32, #tpu.memory_space<vmem>>, vector<1x8x512xf32>
    %12 = vector.shape_cast %11 : vector<1x8x512xf32> to vector<8x512xf32>
    %c0_12 = arith.constant 0 : index
    %c0_13 = arith.constant 0 : index
    %13 = vector.load %arg2[%c0_12, %c0_13] : memref<128x512xf32, #tpu.memory_space<vmem>>, vector<128x512xf32>
    %cst_14 = arith.constant dense<0.000000e+00> : vector<8x512xf32>
    %14 = tpu.matmul %9, %13, %cst_14 {dimension_numbers = #tpu.dot_dimension_numbers<[1], [0], [0], [1], [0, 0, 1, 1], [], []>} : vector<8x128xf32>, vector<128x512xf32>, vector<8x512xf32> -> vector<8x512xf32>
    %15 = arith.addf %12, %14 : vector<8x512xf32>
    %16 = vector.extract_strided_slice %15 {offsets = [0, 0], sizes = [8, 384], strides = [1, 1]} : vector<8x512xf32> to vector<8x384xf32>
    %17 = arith.negf %16 : vector<8x384xf32>
    %18 = math.exp %17 : vector<8x384xf32>
    %cst_15 = arith.constant 1.000000e+00 : f32
    %19 = vector.broadcast %cst_15 : f32 to vector<8x384xf32>
    %20 = arith.addf %19, %18 : vector<8x384xf32>
    %21 = arith.divf %19, %20 : vector<8x384xf32>
    %22 = vector.extract_strided_slice %21 {offsets = [0, 0], sizes = [8, 128], strides = [1, 1]} : vector<8x384xf32> to vector<8x128xf32>
    %23 = vector.extract_strided_slice %21 {offsets = [0, 128], sizes = [8, 128], strides = [1, 1]} : vector<8x384xf32> to vector<8x128xf32>
    %24 = vector.extract_strided_slice %21 {offsets = [0, 256], sizes = [8, 128], strides = [1, 1]} : vector<8x384xf32> to vector<8x128xf32>
    %25 = vector.extract_strided_slice %15 {offsets = [0, 384], sizes = [8, 128], strides = [1, 1]} : vector<8x512xf32> to vector<8x128xf32>
    %26 = math.tanh %25 : vector<8x128xf32>
    %27 = arith.mulf %23, %9 : vector<8x128xf32>
    %28 = arith.mulf %22, %26 : vector<8x128xf32>
    %29 = arith.addf %27, %28 : vector<8x128xf32>
    %30 = math.tanh %29 : vector<8x128xf32>
    %31 = arith.mulf %24, %30 : vector<8x128xf32>
    %c1_i32 = arith.constant 1 : i32
    %32 = arith.index_cast %c1_i32 : i32 to index
    %c0_16 = arith.constant 0 : index
    %c0_17 = arith.constant 0 : index
    %33 = vector.load %arg11[%32, %c0_16, %c0_17] : memref<8x8x512xf32, #tpu.memory_space<vmem>>, vector<1x8x512xf32>
    %34 = vector.shape_cast %33 : vector<1x8x512xf32> to vector<8x512xf32>
    %c0_18 = arith.constant 0 : index
    %c0_19 = arith.constant 0 : index
    %35 = vector.load %arg2[%c0_18, %c0_19] : memref<128x512xf32, #tpu.memory_space<vmem>>, vector<128x512xf32>
    %cst_20 = arith.constant dense<0.000000e+00> : vector<8x512xf32>
    %36 = tpu.matmul %31, %35, %cst_20 {dimension_numbers = #tpu.dot_dimension_numbers<[1], [0], [0], [1], [0, 0, 1, 1], [], []>} : vector<8x128xf32>, vector<128x512xf32>, vector<8x512xf32> -> vector<8x512xf32>
    %37 = arith.addf %34, %36 : vector<8x512xf32>
    %38 = vector.extract_strided_slice %37 {offsets = [0, 0], sizes = [8, 384], strides = [1, 1]} : vector<8x512xf32> to vector<8x384xf32>
    %39 = arith.negf %38 : vector<8x384xf32>
    %40 = math.exp %39 : vector<8x384xf32>
    %cst_21 = arith.constant 1.000000e+00 : f32
    %41 = vector.broadcast %cst_21 : f32 to vector<8x384xf32>
    %42 = arith.addf %41, %40 : vector<8x384xf32>
    %43 = arith.divf %41, %42 : vector<8x384xf32>
    %44 = vector.extract_strided_slice %43 {offsets = [0, 0], sizes = [8, 128], strides = [1, 1]} : vector<8x384xf32> to vector<8x128xf32>
    %45 = vector.extract_strided_slice %43 {offsets = [0, 128], sizes = [8, 128], strides = [1, 1]} : vector<8x384xf32> to vector<8x128xf32>
    %46 = vector.extract_strided_slice %43 {offsets = [0, 256], sizes = [8, 128], strides = [1, 1]} : vector<8x384xf32> to vector<8x128xf32>
    %47 = vector.extract_strided_slice %37 {offsets = [0, 384], sizes = [8, 128], strides = [1, 1]} : vector<8x512xf32> to vector<8x128xf32>
    %48 = math.tanh %47 : vector<8x128xf32>
    %49 = arith.mulf %45, %29 : vector<8x128xf32>
    %50 = arith.mulf %44, %48 : vector<8x128xf32>
    %51 = arith.addf %49, %50 : vector<8x128xf32>
    %52 = math.tanh %51 : vector<8x128xf32>
    %53 = arith.mulf %46, %52 : vector<8x128xf32>
    %c2_i32 = arith.constant 2 : i32
    %54 = arith.index_cast %c2_i32 : i32 to index
    %c0_22 = arith.constant 0 : index
    %c0_23 = arith.constant 0 : index
    %55 = vector.load %arg11[%54, %c0_22, %c0_23] : memref<8x8x512xf32, #tpu.memory_space<vmem>>, vector<1x8x512xf32>
    %56 = vector.shape_cast %55 : vector<1x8x512xf32> to vector<8x512xf32>
    %c0_24 = arith.constant 0 : index
    %c0_25 = arith.constant 0 : index
    %57 = vector.load %arg2[%c0_24, %c0_25] : memref<128x512xf32, #tpu.memory_space<vmem>>, vector<128x512xf32>
    %cst_26 = arith.constant dense<0.000000e+00> : vector<8x512xf32>
    %58 = tpu.matmul %53, %57, %cst_26 {dimension_numbers = #tpu.dot_dimension_numbers<[1], [0], [0], [1], [0, 0, 1, 1], [], []>} : vector<8x128xf32>, vector<128x512xf32>, vector<8x512xf32> -> vector<8x512xf32>
    %59 = arith.addf %56, %58 : vector<8x512xf32>
    %60 = vector.extract_strided_slice %59 {offsets = [0, 0], sizes = [8, 384], strides = [1, 1]} : vector<8x512xf32> to vector<8x384xf32>
    %61 = arith.negf %60 : vector<8x384xf32>
    %62 = math.exp %61 : vector<8x384xf32>
    %cst_27 = arith.constant 1.000000e+00 : f32
    %63 = vector.broadcast %cst_27 : f32 to vector<8x384xf32>
    %64 = arith.addf %63, %62 : vector<8x384xf32>
    %65 = arith.divf %63, %64 : vector<8x384xf32>
    %66 = vector.extract_strided_slice %65 {offsets = [0, 0], sizes = [8, 128], strides = [1, 1]} : vector<8x384xf32> to vector<8x128xf32>
    %67 = vector.extract_strided_slice %65 {offsets = [0, 128], sizes = [8, 128], strides = [1, 1]} : vector<8x384xf32> to vector<8x128xf32>
    %68 = vector.extract_strided_slice %65 {offsets = [0, 256], sizes = [8, 128], strides = [1, 1]} : vector<8x384xf32> to vector<8x128xf32>
    %69 = vector.extract_strided_slice %59 {offsets = [0, 384], sizes = [8, 128], strides = [1, 1]} : vector<8x512xf32> to vector<8x128xf32>
    %70 = math.tanh %69 : vector<8x128xf32>
    %71 = arith.mulf %67, %51 : vector<8x128xf32>
    %72 = arith.mulf %66, %70 : vector<8x128xf32>
    %73 = arith.addf %71, %72 : vector<8x128xf32>
    %74 = math.tanh %73 : vector<8x128xf32>
    %75 = arith.mulf %68, %74 : vector<8x128xf32>
    %c3_i32 = arith.constant 3 : i32
    %76 = arith.index_cast %c3_i32 : i32 to index
    %c0_28 = arith.constant 0 : index
    %c0_29 = arith.constant 0 : index
    %77 = vector.load %arg11[%76, %c0_28, %c0_29] : memref<8x8x512xf32, #tpu.memory_space<vmem>>, vector<1x8x512xf32>
    %78 = vector.shape_cast %77 : vector<1x8x512xf32> to vector<8x512xf32>
    %c0_30 = arith.constant 0 : index
    %c0_31 = arith.constant 0 : index
    %79 = vector.load %arg2[%c0_30, %c0_31] : memref<128x512xf32, #tpu.memory_space<vmem>>, vector<128x512xf32>
    %cst_32 = arith.constant dense<0.000000e+00> : vector<8x512xf32>
    %80 = tpu.matmul %75, %79, %cst_32 {dimension_numbers = #tpu.dot_dimension_numbers<[1], [0], [0], [1], [0, 0, 1, 1], [], []>} : vector<8x128xf32>, vector<128x512xf32>, vector<8x512xf32> -> vector<8x512xf32>
    %81 = arith.addf %78, %80 : vector<8x512xf32>
    %82 = vector.extract_strided_slice %81 {offsets = [0, 0], sizes = [8, 384], strides = [1, 1]} : vector<8x512xf32> to vector<8x384xf32>
    %83 = arith.negf %82 : vector<8x384xf32>
    %84 = math.exp %83 : vector<8x384xf32>
    %cst_33 = arith.constant 1.000000e+00 : f32
    %85 = vector.broadcast %cst_33 : f32 to vector<8x384xf32>
    %86 = arith.addf %85, %84 : vector<8x384xf32>
    %87 = arith.divf %85, %86 : vector<8x384xf32>
    %88 = vector.extract_strided_slice %87 {offsets = [0, 0], sizes = [8, 128], strides = [1, 1]} : vector<8x384xf32> to vector<8x128xf32>
    %89 = vector.extract_strided_slice %87 {offsets = [0, 128], sizes = [8, 128], strides = [1, 1]} : vector<8x384xf32> to vector<8x128xf32>
    %90 = vector.extract_strided_slice %87 {offsets = [0, 256], sizes = [8, 128], strides = [1, 1]} : vector<8x384xf32> to vector<8x128xf32>
    %91 = vector.extract_strided_slice %81 {offsets = [0, 384], sizes = [8, 128], strides = [1, 1]} : vector<8x512xf32> to vector<8x128xf32>
    %92 = math.tanh %91 : vector<8x128xf32>
    %93 = arith.mulf %89, %73 : vector<8x128xf32>
    %94 = arith.mulf %88, %92 : vector<8x128xf32>
    %95 = arith.addf %93, %94 : vector<8x128xf32>
    %96 = math.tanh %95 : vector<8x128xf32>
    %97 = arith.mulf %90, %96 : vector<8x128xf32>
    %c4_i32 = arith.constant 4 : i32
    %98 = arith.index_cast %c4_i32 : i32 to index
    %c0_34 = arith.constant 0 : index
    %c0_35 = arith.constant 0 : index
    %99 = vector.load %arg11[%98, %c0_34, %c0_35] : memref<8x8x512xf32, #tpu.memory_space<vmem>>, vector<1x8x512xf32>
    %100 = vector.shape_cast %99 : vector<1x8x512xf32> to vector<8x512xf32>
    %c0_36 = arith.constant 0 : index
    %c0_37 = arith.constant 0 : index
    %101 = vector.load %arg2[%c0_36, %c0_37] : memref<128x512xf32, #tpu.memory_space<vmem>>, vector<128x512xf32>
    %cst_38 = arith.constant dense<0.000000e+00> : vector<8x512xf32>
    %102 = tpu.matmul %97, %101, %cst_38 {dimension_numbers = #tpu.dot_dimension_numbers<[1], [0], [0], [1], [0, 0, 1, 1], [], []>} : vector<8x128xf32>, vector<128x512xf32>, vector<8x512xf32> -> vector<8x512xf32>
    %103 = arith.addf %100, %102 : vector<8x512xf32>
    %104 = vector.extract_strided_slice %103 {offsets = [0, 0], sizes = [8, 384], strides = [1, 1]} : vector<8x512xf32> to vector<8x384xf32>
    %105 = arith.negf %104 : vector<8x384xf32>
    %106 = math.exp %105 : vector<8x384xf32>
    %cst_39 = arith.constant 1.000000e+00 : f32
    %107 = vector.broadcast %cst_39 : f32 to vector<8x384xf32>
    %108 = arith.addf %107, %106 : vector<8x384xf32>
    %109 = arith.divf %107, %108 : vector<8x384xf32>
    %110 = vector.extract_strided_slice %109 {offsets = [0, 0], sizes = [8, 128], strides = [1, 1]} : vector<8x384xf32> to vector<8x128xf32>
    %111 = vector.extract_strided_slice %109 {offsets = [0, 128], sizes = [8, 128], strides = [1, 1]} : vector<8x384xf32> to vector<8x128xf32>
    %112 = vector.extract_strided_slice %109 {offsets = [0, 256], sizes = [8, 128], strides = [1, 1]} : vector<8x384xf32> to vector<8x128xf32>
    %113 = vector.extract_strided_slice %103 {offsets = [0, 384], sizes = [8, 128], strides = [1, 1]} : vector<8x512xf32> to vector<8x128xf32>
    %114 = math.tanh %113 : vector<8x128xf32>
    %115 = arith.mulf %111, %95 : vector<8x128xf32>
    %116 = arith.mulf %110, %114 : vector<8x128xf32>
    %117 = arith.addf %115, %116 : vector<8x128xf32>
    %118 = math.tanh %117 : vector<8x128xf32>
    %119 = arith.mulf %112, %118 : vector<8x128xf32>
    %c5_i32 = arith.constant 5 : i32
    %120 = arith.index_cast %c5_i32 : i32 to index
    %c0_40 = arith.constant 0 : index
    %c0_41 = arith.constant 0 : index
    %121 = vector.load %arg11[%120, %c0_40, %c0_41] : memref<8x8x512xf32, #tpu.memory_space<vmem>>, vector<1x8x512xf32>
    %122 = vector.shape_cast %121 : vector<1x8x512xf32> to vector<8x512xf32>
    %c0_42 = arith.constant 0 : index
    %c0_43 = arith.constant 0 : index
    %123 = vector.load %arg2[%c0_42, %c0_43] : memref<128x512xf32, #tpu.memory_space<vmem>>, vector<128x512xf32>
    %cst_44 = arith.constant dense<0.000000e+00> : vector<8x512xf32>
    %124 = tpu.matmul %119, %123, %cst_44 {dimension_numbers = #tpu.dot_dimension_numbers<[1], [0], [0], [1], [0, 0, 1, 1], [], []>} : vector<8x128xf32>, vector<128x512xf32>, vector<8x512xf32> -> vector<8x512xf32>
    %125 = arith.addf %122, %124 : vector<8x512xf32>
    %126 = vector.extract_strided_slice %125 {offsets = [0, 0], sizes = [8, 384], strides = [1, 1]} : vector<8x512xf32> to vector<8x384xf32>
    %127 = arith.negf %126 : vector<8x384xf32>
    %128 = math.exp %127 : vector<8x384xf32>
    %cst_45 = arith.constant 1.000000e+00 : f32
    %129 = vector.broadcast %cst_45 : f32 to vector<8x384xf32>
    %130 = arith.addf %129, %128 : vector<8x384xf32>
    %131 = arith.divf %129, %130 : vector<8x384xf32>
    %132 = vector.extract_strided_slice %131 {offsets = [0, 0], sizes = [8, 128], strides = [1, 1]} : vector<8x384xf32> to vector<8x128xf32>
    %133 = vector.extract_strided_slice %131 {offsets = [0, 128], sizes = [8, 128], strides = [1, 1]} : vector<8x384xf32> to vector<8x128xf32>
    %134 = vector.extract_strided_slice %131 {offsets = [0, 256], sizes = [8, 128], strides = [1, 1]} : vector<8x384xf32> to vector<8x128xf32>
    %135 = vector.extract_strided_slice %125 {offsets = [0, 384], sizes = [8, 128], strides = [1, 1]} : vector<8x512xf32> to vector<8x128xf32>
    %136 = math.tanh %135 : vector<8x128xf32>
    %137 = arith.mulf %133, %117 : vector<8x128xf32>
    %138 = arith.mulf %132, %136 : vector<8x128xf32>
    %139 = arith.addf %137, %138 : vector<8x128xf32>
    %140 = math.tanh %139 : vector<8x128xf32>
    %141 = arith.mulf %134, %140 : vector<8x128xf32>
    %c6_i32 = arith.constant 6 : i32
    %142 = arith.index_cast %c6_i32 : i32 to index
    %c0_46 = arith.constant 0 : index
    %c0_47 = arith.constant 0 : index
    %143 = vector.load %arg11[%142, %c0_46, %c0_47] : memref<8x8x512xf32, #tpu.memory_space<vmem>>, vector<1x8x512xf32>
    %144 = vector.shape_cast %143 : vector<1x8x512xf32> to vector<8x512xf32>
    %c0_48 = arith.constant 0 : index
    %c0_49 = arith.constant 0 : index
    %145 = vector.load %arg2[%c0_48, %c0_49] : memref<128x512xf32, #tpu.memory_space<vmem>>, vector<128x512xf32>
    %cst_50 = arith.constant dense<0.000000e+00> : vector<8x512xf32>
    %146 = tpu.matmul %141, %145, %cst_50 {dimension_numbers = #tpu.dot_dimension_numbers<[1], [0], [0], [1], [0, 0, 1, 1], [], []>} : vector<8x128xf32>, vector<128x512xf32>, vector<8x512xf32> -> vector<8x512xf32>
    %147 = arith.addf %144, %146 : vector<8x512xf32>
    %148 = vector.extract_strided_slice %147 {offsets = [0, 0], sizes = [8, 384], strides = [1, 1]} : vector<8x512xf32> to vector<8x384xf32>
    %149 = arith.negf %148 : vector<8x384xf32>
    %150 = math.exp %149 : vector<8x384xf32>
    %cst_51 = arith.constant 1.000000e+00 : f32
    %151 = vector.broadcast %cst_51 : f32 to vector<8x384xf32>
    %152 = arith.addf %151, %150 : vector<8x384xf32>
    %153 = arith.divf %151, %152 : vector<8x384xf32>
    %154 = vector.extract_strided_slice %153 {offsets = [0, 0], sizes = [8, 128], strides = [1, 1]} : vector<8x384xf32> to vector<8x128xf32>
    %155 = vector.extract_strided_slice %153 {offsets = [0, 128], sizes = [8, 128], strides = [1, 1]} : vector<8x384xf32> to vector<8x128xf32>
    %156 = vector.extract_strided_slice %153 {offsets = [0, 256], sizes = [8, 128], strides = [1, 1]} : vector<8x384xf32> to vector<8x128xf32>
    %157 = vector.extract_strided_slice %147 {offsets = [0, 384], sizes = [8, 128], strides = [1, 1]} : vector<8x512xf32> to vector<8x128xf32>
    %158 = math.tanh %157 : vector<8x128xf32>
    %159 = arith.mulf %155, %139 : vector<8x128xf32>
    %160 = arith.mulf %154, %158 : vector<8x128xf32>
    %161 = arith.addf %159, %160 : vector<8x128xf32>
    %162 = math.tanh %161 : vector<8x128xf32>
    %163 = arith.mulf %156, %162 : vector<8x128xf32>
    %c7_i32 = arith.constant 7 : i32
    %164 = arith.index_cast %c7_i32 : i32 to index
    %c0_52 = arith.constant 0 : index
    %c0_53 = arith.constant 0 : index
    %165 = vector.load %arg11[%164, %c0_52, %c0_53] : memref<8x8x512xf32, #tpu.memory_space<vmem>>, vector<1x8x512xf32>
    %166 = vector.shape_cast %165 : vector<1x8x512xf32> to vector<8x512xf32>
    %c0_54 = arith.constant 0 : index
    %c0_55 = arith.constant 0 : index
    %167 = vector.load %arg2[%c0_54, %c0_55] : memref<128x512xf32, #tpu.memory_space<vmem>>, vector<128x512xf32>
    %cst_56 = arith.constant dense<0.000000e+00> : vector<8x512xf32>
    %168 = tpu.matmul %163, %167, %cst_56 {dimension_numbers = #tpu.dot_dimension_numbers<[1], [0], [0], [1], [0, 0, 1, 1], [], []>} : vector<8x128xf32>, vector<128x512xf32>, vector<8x512xf32> -> vector<8x512xf32>
    %169 = arith.addf %166, %168 : vector<8x512xf32>
    %170 = vector.extract_strided_slice %169 {offsets = [0, 0], sizes = [8, 384], strides = [1, 1]} : vector<8x512xf32> to vector<8x384xf32>
    %171 = arith.negf %170 : vector<8x384xf32>
    %172 = math.exp %171 : vector<8x384xf32>
    %cst_57 = arith.constant 1.000000e+00 : f32
    %173 = vector.broadcast %cst_57 : f32 to vector<8x384xf32>
    %174 = arith.addf %173, %172 : vector<8x384xf32>
    %175 = arith.divf %173, %174 : vector<8x384xf32>
    %176 = vector.extract_strided_slice %175 {offsets = [0, 0], sizes = [8, 128], strides = [1, 1]} : vector<8x384xf32> to vector<8x128xf32>
    %177 = vector.extract_strided_slice %175 {offsets = [0, 128], sizes = [8, 128], strides = [1, 1]} : vector<8x384xf32> to vector<8x128xf32>
    %178 = vector.extract_strided_slice %175 {offsets = [0, 256], sizes = [8, 128], strides = [1, 1]} : vector<8x384xf32> to vector<8x128xf32>
    %179 = vector.extract_strided_slice %169 {offsets = [0, 384], sizes = [8, 128], strides = [1, 1]} : vector<8x512xf32> to vector<8x128xf32>
    %180 = math.tanh %179 : vector<8x128xf32>
    %181 = arith.mulf %177, %161 : vector<8x128xf32>
    %182 = arith.mulf %176, %180 : vector<8x128xf32>
    %183 = arith.addf %181, %182 : vector<8x128xf32>
    %184 = math.tanh %183 : vector<8x128xf32>
    %185 = arith.mulf %178, %184 : vector<8x128xf32>
    %c8_i32 = arith.constant 8 : i32
    %c0_58 = arith.constant 0 : index
    %c0_59 = arith.constant 0 : index
    %186 = vector.load %arg4[%c0_58, %c0_59] : memref<8x10xf32, #tpu.memory_space<vmem>>, vector<8x10xf32>
    %c0_60 = arith.constant 0 : index
    %c0_61 = arith.constant 0 : index
    %187 = vector.load %arg5[%c0_60, %c0_61] : memref<10x128xf32, #tpu.memory_space<vmem>>, vector<10x128xf32>
    %cst_62 = arith.constant dense<0.000000e+00> : vector<8x128xf32>
    %188 = tpu.matmul %186, %187, %cst_62 {dimension_numbers = #tpu.dot_dimension_numbers<[1], [0], [0], [1], [0, 0, 1, 1], [], []>} : vector<8x10xf32>, vector<10x128xf32>, vector<8x128xf32> -> vector<8x128xf32>
    %c0_63 = arith.constant 0 : index
    %c0_64 = arith.constant 0 : index
    %189 = vector.load %arg6[%c0_63, %c0_64] : memref<1x128xf32, #tpu.memory_space<vmem>>, vector<1x128xf32>
    %190 = vector.broadcast %189 : vector<1x128xf32> to vector<8x128xf32>
    %191 = arith.addf %188, %190 : vector<8x128xf32>
    %cst_65 = arith.constant 0.000000e+00 : f32
    %192 = vector.broadcast %cst_65 : f32 to vector<8x128xf32>
    %193 = arith.maximumf %191, %192 : vector<8x128xf32>
    %c0_66 = arith.constant 0 : index
    %c0_67 = arith.constant 0 : index
    %194 = vector.load %arg7[%c0_66, %c0_67] : memref<128x10xf32, #tpu.memory_space<vmem>>, vector<128x10xf32>
    %cst_68 = arith.constant dense<0.000000e+00> : vector<8x10xf32>
    %195 = tpu.matmul %185, %194, %cst_68 {dimension_numbers = #tpu.dot_dimension_numbers<[1], [0], [0], [1], [0, 0, 1, 1], [], []>} : vector<8x128xf32>, vector<128x10xf32>, vector<8x10xf32> -> vector<8x10xf32>
    %c0_69 = arith.constant 0 : index
    %c0_70 = arith.constant 0 : index
    %196 = vector.load %arg8[%c0_69, %c0_70] : memref<128x10xf32, #tpu.memory_space<vmem>>, vector<128x10xf32>
    %cst_71 = arith.constant dense<0.000000e+00> : vector<8x10xf32>
    %197 = tpu.matmul %193, %196, %cst_71 {dimension_numbers = #tpu.dot_dimension_numbers<[1], [0], [0], [1], [0, 0, 1, 1], [], []>} : vector<8x128xf32>, vector<128x10xf32>, vector<8x10xf32> -> vector<8x10xf32>
    %198 = arith.addf %195, %197 : vector<8x10xf32>
    %c0_72 = arith.constant 0 : index
    %c0_73 = arith.constant 0 : index
    %199 = vector.load %arg9[%c0_72, %c0_73] : memref<1x10xf32, #tpu.memory_space<vmem>>, vector<1x10xf32>
    %200 = vector.broadcast %199 : vector<1x10xf32> to vector<8x10xf32>
    %201 = arith.addf %198, %200 : vector<8x10xf32>
    %c0_74 = arith.constant 0 : index
    %c0_75 = arith.constant 0 : index
    %202 = vector.load %arg10[%c0_74, %c0_75] : memref<8x10xf32, #tpu.memory_space<vmem>>, vector<8x10xf32>
    tpu.vector_store %arg10[%c0_74, %c0_75], %201 {strides = array<i32>} : memref<8x10xf32, #tpu.memory_space<vmem>>, vector<8x10xf32>,
    return
  }
}

</mosaic_0001>

<llo_original>
// kernel: tpu_custom_call.1
$region0: #{tpu_custom_call.1}
  #allocation0 [shape = 'u32[]', space=smem, size = 0x4, offset = 0x4, fixed_abs, tag = 'smem constant byte address 0x4 - core index']
  #allocation1 [shape = 'u32[144,128]{1,0:T(1,128)}', space=vmem, size = 0x12000, scoped, tag = 'internal scratch']
  #allocation2 [shape = 'f32[8,8,512]{2,1,0:T(8,128)}', space=vmem, size = 0x20000, scoped, tag = 'scratch operand']
  %s0 = inlined_call_operand.vmem [shape: f32[8,8,300], index: 0, kind: input, shape index: {}]
  %s1 = inlined_call_operand.hbm [shape: f32[300,512], index: 1, kind: input, shape index: {}]
  %s2 = inlined_call_operand.hbm [shape: f32[128,512], index: 2, kind: input, shape index: {}]
  %s3 = inlined_call_operand.vmem [shape: f32[1,512], index: 3, kind: input, shape index: {}]
  %s4 = inlined_call_operand.vmem [shape: f32[8,10], index: 4, kind: input, shape index: {}]
  %s5 = inlined_call_operand.vmem [shape: f32[10,128], index: 5, kind: input, shape index: {}]
  %s6 = inlined_call_operand.vmem [shape: f32[1,128], index: 6, kind: input, shape index: {}]
  %s7 = inlined_call_operand.vmem [shape: f32[128,10], index: 7, kind: input, shape index: {}]
  %s8 = inlined_call_operand.vmem [shape: f32[128,10], index: 8, kind: input, shape index: {}]
  %s9 = inlined_call_operand.vmem [shape: f32[1,10], index: 9, kind: input, shape index: {}]
  %s10 = inlined_call_operand.hbm [shape: f32[8,10], index: 10, kind: output, shape index: {}]
  %s11 = sld [smem:[#allocation0]]
  $region58: #{tpu_custom_call.1} parent=0
    _
  %s13 = ssub.s32 1, %s11
  %s14 = scalar_select 0, %s13, %s11
  $region1: #{tpu_custom_call.1} parent=0
    #allocation3 [shape = 'u8[622592]{0}', space=vmem, size = 0x98000, scoped, tag = 'input window, operand 1, single buffered']
    #allocation4 [shape = 's32[1]{0}', space=sflag, size = 0x4, scoped, tag = 'scoped memory for tpu_custom_call.1']
    #allocation5 [shape = 's32[1]{0}', space=sflag, size = 0x4, scoped, tag = 'scoped memory for tpu_custom_call.1']
    #allocation6 [shape = 'u8[262144]{0}', space=vmem, size = 0x40000, scoped, tag = 'input window, operand 2, single buffered']
    #allocation7 [shape = 's32[1]{0}', space=sflag, size = 0x4, scoped, tag = 'scoped memory for tpu_custom_call.1']
    #allocation8 [shape = 'u8[4096]{0}', space=vmem, size = 0x1000, scoped, tag = 'output window, operand 0, single buffered']
    %15 = vsyncpa [#allocation4], 0
    %16 = vsyncpa [#allocation7], 0
    %17 = vsyncpa [#allocation5], 0
    // Predicated region
    $region2: #{tpu_custom_call.1} parent=1 // pred_check
      _
    $region3: #{tpu_custom_call.1} parent=1 // pred_check_branch
      %19 = sbr.rel (0) target = $region5
    $region4: #{tpu_custom_call.1} parent=1 // pred_region
      _
    $region5: #{tpu_custom_call.1} parent=1 // pred_fallthru
      _
    // Predicated region
    $region6: #{tpu_custom_call.1} parent=1 // pred_check
      _
    $region7: #{tpu_custom_call.1} parent=1 // pred_check_branch
      %21 = sbr.rel (0) target = $region9
    $region8: #{tpu_custom_call.1} parent=1 // pred_region
      %s23 = ssub.s32 19456, 19456
      %24 = vsyncadd [#allocation4], %s23
      %s25 = sshll.u32 [#allocation3], 4
      %s26 = int_to_ptr.vmem [resolvable:$true] %s25
      %31 = dma.hbm_to_vmem [thread:$0]  %s1, 19456, %s26, [#allocation4], 512, 512, 32
    $region9: #{tpu_custom_call.1} parent=1 // pred_fallthru
      _
    // Predicated region
    $region10: #{tpu_custom_call.1} parent=1 // pred_check
      _
    $region11: #{tpu_custom_call.1} parent=1 // pred_check_branch
      %33 = sbr.rel (0) target = $region13
    $region12: #{tpu_custom_call.1} parent=1 // pred_region
      %s35 = ssub.s32 8192, 8192
      %36 = vsyncadd [#allocation7], %s35
      %s37 = sshll.u32 [#allocation6], 4
      %s38 = int_to_ptr.vmem [resolvable:$true] %s37
      %43 = dma.hbm_to_vmem [thread:$0]  %s2, 8192, %s38, [#allocation7], 512, 512, 32
    $region13: #{tpu_custom_call.1} parent=1 // pred_fallthru
      _
    // Predicated region
    $region14: #{tpu_custom_call.1} parent=1 // pred_check
      _
    $region15: #{tpu_custom_call.1} parent=1 // pred_check_branch
      %45 = sbr.rel (0) target = $region17
    $region16: #{tpu_custom_call.1} parent=1 // pred_region
      _
    $region17: #{tpu_custom_call.1} parent=1 // pred_fallthru
      _
    // Predicated region
    $region18: #{tpu_custom_call.1} parent=1 // pred_check
      _
    $region19: #{tpu_custom_call.1} parent=1 // pred_check_branch
      %47 = sbr.rel (0) target = $region21
    $region20: #{tpu_custom_call.1} parent=1 // pred_region
      _
    $region21: #{tpu_custom_call.1} parent=1 // pred_fallthru
      _
    // Predicated region
    $region22: #{tpu_custom_call.1} parent=1 // pred_check
      _
    $region23: #{tpu_custom_call.1} parent=1 // pred_check_branch
      %49 = sbr.rel (0) target = $region25
    $region24: #{tpu_custom_call.1} parent=1 // pred_region
      _
    $region25: #{tpu_custom_call.1} parent=1 // pred_fallthru
      _
    // Predicated region
    $region26: #{tpu_custom_call.1} parent=1 // pred_check
      _
    $region27: #{tpu_custom_call.1} parent=1 // pred_check_branch
      %51 = sbr.rel (0) target = $region29
    $region28: #{tpu_custom_call.1} parent=1 // pred_region
      _
    $region29: #{tpu_custom_call.1} parent=1 // pred_fallthru
      _
    // Predicated region
    $region30: #{tpu_custom_call.1} parent=1 // pred_check
      _
    $region31: #{tpu_custom_call.1} parent=1 // pred_check_branch
      %53 = sbr.rel (0) target = $region33
    $region32: #{tpu_custom_call.1} parent=1 // pred_region
      _
    $region33: #{tpu_custom_call.1} parent=1 // pred_fallthru
      _
    // Predicated region
    $region34: #{tpu_custom_call.1} parent=1 // pred_check
      _
    $region35: #{tpu_custom_call.1} parent=1 // pred_check_branch
      %55 = sbr.rel (0) target = $region37
    $region36: #{tpu_custom_call.1} parent=1 // pred_region
      _
    $region37: #{tpu_custom_call.1} parent=1 // pred_fallthru
      _
    // Predicated region
    $region38: #{tpu_custom_call.1} parent=1 // pred_check
      _
    $region39: #{tpu_custom_call.1} parent=1 // pred_check_branch
      %57 = sbr.rel (0) target = $region41
    $region40: #{tpu_custom_call.1} parent=1 // pred_region
      _
    $region41: #{tpu_custom_call.1} parent=1 // pred_fallthru
      _
    // Predicated region
    $region42: #{tpu_custom_call.1} parent=1 // pred_check
      _
    $region43: #{tpu_custom_call.1} parent=1 // pred_check_branch
      %59 = sbr.rel (0) target = $region45
    $region44: #{tpu_custom_call.1} parent=1 // pred_region
      %60 = dma.done [#allocation4], 19456
    $region45: #{tpu_custom_call.1} parent=1 // pred_fallthru
      _
    // Predicated region
    $region46: #{tpu_custom_call.1} parent=1 // pred_check
      _
    $region47: #{tpu_custom_call.1} parent=1 // pred_check_branch
      %62 = sbr.rel (0) target = $region49
    $region48: #{tpu_custom_call.1} parent=1 // pred_region
      %63 = dma.done [#allocation7], 8192
    $region49: #{tpu_custom_call.1} parent=1 // pred_fallthru
      _
    %v64 = vld [vmem:[%s0] sm:$0xff]
    %v65 = vld [vmem:[%s0 + $0x8] sm:$0xff]
    %v66 = vld [vmem:[%s0 + $0x10] sm:$0xff]
    %v67 = vld [vmem:[%s0 + $0x18] sm:$0xff]
    %v68 = vld [vmem:[%s0 + $0x20] sm:$0xff]
    %v69 = vld [vmem:[%s0 + $0x28] sm:$0xff]
    %v70 = vld [vmem:[%s0 + $0x30] sm:$0xff]
    %v71 = vld [vmem:[%s0 + $0x38] sm:$0xff]
    %v72 = vld [vmem:[%s0 + $0x40] sm:$0xff]
    %v73 = vld [vmem:[%s0 + $0x48] sm:$0xff]
    %v74 = vld [vmem:[%s0 + $0x50] sm:$0xff]
    %v75 = vld [vmem:[%s0 + $0x58] sm:$0xff]
    %v76 = vld [vmem:[%s0 + $0x60] sm:$0xff]
    %v77 = vld [vmem:[%s0 + $0x68] sm:$0xff]
    %v78 = vld [vmem:[%s0 + $0x70] sm:$0xff]
    %v79 = vld [vmem:[%s0 + $0x78] sm:$0xff]
    %v80 = vld [vmem:[%s0 + $0x80] sm:$0xff]
    %v81 = vld [vmem:[%s0 + $0x88] sm:$0xff]
    %v82 = vld [vmem:[%s0 + $0x90] sm:$0xff]
    %v83 = vld [vmem:[%s0 + $0x98] sm:$0xff]
    %v84 = vld [vmem:[%s0 + $0xa0] sm:$0xff]
    %v85 = vld [vmem:[%s0 + $0xa8] sm:$0xff]
    %v86 = vld [vmem:[%s0 + $0xb0] sm:$0xff]
    %v87 = vld [vmem:[%s0 + $0xb8] sm:$0xff]
    %v88 = vld [vmem:[#allocation3] sm:$0xff]
    %v89 = vld [vmem:[#allocation3 + $0x8] sm:$0xff]
    %v90 = vld [vmem:[#allocation3 + $0x10] sm:$0xff]
    %v91 = vld [vmem:[#allocation3 + $0x18] sm:$0xff]
    %v92 = vld [vmem:[#allocation3 + $0x20] sm:$0xff]
    %v93 = vld [vmem:[#allocation3 + $0x28] sm:$0xff]
    %v94 = vld [vmem:[#allocation3 + $0x30] sm:$0xff]
    %v95 = vld [vmem:[#allocation3 + $0x38] sm:$0xff]
    %v96 = vld [vmem:[#allocation3 + $0x40] sm:$0xff]
    %v97 = vld [vmem:[#allocation3 + $0x48] sm:$0xff]
    %v98 = vld [vmem:[#allocation3 + $0x50] sm:$0xff]
    %v99 = vld [vmem:[#allocation3 + $0x58] sm:$0xff]
    %v100 = vld [vmem:[#allocation3 + $0x60] sm:$0xff]
    %v101 = vld [vmem:[#allocation3 + $0x68] sm:$0xff]
    %v102 = vld [vmem:[#allocation3 + $0x70] sm:$0xff]
    %v103 = vld [vmem:[#allocation3 + $0x78] sm:$0xff]
    %v104 = vld [vmem:[#allocation3 + $0x80] sm:$0xff]
    %v105 = vld [vmem:[#allocation3 + $0x88] sm:$0xff]
    %v106 = vld [vmem:[#allocation3 + $0x90] sm:$0xff]
    %v107 = vld [vmem:[#allocation3 + $0x98] sm:$0xff]
    %v108 = vld [vmem:[#allocation3 + $0xa0] sm:$0xff]
    %v109 = vld [vmem:[#allocation3 + $0xa8] sm:$0xff]
    %v110 = vld [vmem:[#allocation3 + $0xb0] sm:$0xff]
    %v111 = vld [vmem:[#allocation3 + $0xb8] sm:$0xff]
    %v112 = vld [vmem:[#allocation3 + $0xc0] sm:$0xff]
    %v113 = vld [vmem:[#allocation3 + $0xc8] sm:$0xff]
    %v114 = vld [vmem:[#allocation3 + $0xd0] sm:$0xff]
    %v115 = vld [vmem:[#allocation3 + $0xd8] sm:$0xff]
    %v116 = vld [vmem:[#allocation3 + $0xe0] sm:$0xff]
    %v117 = vld [vmem:[#allocation3 + $0xe8] sm:$0xff]
    %v118 = vld [vmem:[#allocation3 + $0xf0] sm:$0xff]
    %v119 = vld [vmem:[#allocation3 + $0xf8] sm:$0xff]
    %v120 = vld [vmem:[#allocation3 + $0x100] sm:$0xff]
    %v121 = vld [vmem:[#allocation3 + $0x108] sm:$0xff]
    %v122 = vld [vmem:[#allocation3 + $0x110] sm:$0xff]
    %v123 = vld [vmem:[#allocation3 + $0x118] sm:$0xff]
    %v124 = vld [vmem:[#allocation3 + $0x120] sm:$0xff]
    %v125 = vld [vmem:[#allocation3 + $0x128] sm:$0xff]
    %v126 = vld [vmem:[#allocation3 + $0x130] sm:$0xff]
    %v127 = vld [vmem:[#allocation3 + $0x138] sm:$0xff]
    %v128 = vld [vmem:[#allocation3 + $0x140] sm:$0xff]
    %v129 = vld [vmem:[#allocation3 + $0x148] sm:$0xff]
    %v130 = vld [vmem:[#allocation3 + $0x150] sm:$0xff]
    %v131 = vld [vmem:[#allocation3 + $0x158] sm:$0xff]
    %v132 = vld [vmem:[#allocation3 + $0x160] sm:$0xff]
    %v133 = vld [vmem:[#allocation3 + $0x168] sm:$0xff]
    %v134 = vld [vmem:[#allocation3 + $0x170] sm:$0xff]
    %v135 = vld [vmem:[#allocation3 + $0x178] sm:$0xff]
    %v136 = vld [vmem:[#allocation3 + $0x180] sm:$0xff]
    %v137 = vld [vmem:[#allocation3 + $0x188] sm:$0xff]
    %v138 = vld [vmem:[#allocation3 + $0x190] sm:$0xff]
    %v139 = vld [vmem:[#allocation3 + $0x198] sm:$0xff]
    %v140 = vld [vmem:[#allocation3 + $0x1a0] sm:$0xff]
    %v141 = vld [vmem:[#allocation3 + $0x1a8] sm:$0xff]
    %v142 = vld [vmem:[#allocation3 + $0x1b0] sm:$0xff]
    %v143 = vld [vmem:[#allocation3 + $0x1b8] sm:$0xff]
    %v144 = vld [vmem:[#allocation3 + $0x1c0] sm:$0xff]
    %v145 = vld [vmem:[#allocation3 + $0x1c8] sm:$0xff]
    %v146 = vld [vmem:[#allocation3 + $0x1d0] sm:$0xff]
    %v147 = vld [vmem:[#allocation3 + $0x1d8] sm:$0xff]
    %v148 = vld [vmem:[#allocation3 + $0x1e0] sm:$0xff]
    %v149 = vld [vmem:[#allocation3 + $0x1e8] sm:$0xff]
    %v150 = vld [vmem:[#allocation3 + $0x1f0] sm:$0xff]
    %v151 = vld [vmem:[#allocation3 + $0x1f8] sm:$0xff]
    %v152 = vld [vmem:[#allocation3 + $0x200] sm:$0xff]
    %v153 = vld [vmem:[#allocation3 + $0x208] sm:$0xff]
    %v154 = vld [vmem:[#allocation3 + $0x210] sm:$0xff]
    %v155 = vld [vmem:[#allocation3 + $0x218] sm:$0xff]
    %v156 = vld [vmem:[#allocation3 + $0x220] sm:$0xff]
    %v157 = vld [vmem:[#allocation3 + $0x228] sm:$0xff]
    %v158 = vld [vmem:[#allocation3 + $0x230] sm:$0xff]
    %v159 = vld [vmem:[#allocation3 + $0x238] sm:$0xff]
    %v160 = vld [vmem:[#allocation3 + $0x240] sm:$0xff]
    %v161 = vld [vmem:[#allocation3 + $0x248] sm:$0xff]
    %v162 = vld [vmem:[#allocation3 + $0x250] sm:$0xff]
    %v163 = vld [vmem:[#allocation3 + $0x258] sm:$0xff]
    %v164 = vld [vmem:[#allocation3 + $0x260] sm:$0xff]
    %v165 = vld [vmem:[#allocation3 + $0x268] sm:$0xff]
    %v166 = vld [vmem:[#allocation3 + $0x270] sm:$0xff]
    %v167 = vld [vmem:[#allocation3 + $0x278] sm:$0xff]
    %v168 = vld [vmem:[#allocation3 + $0x280] sm:$0xff]
    %v169 = vld [vmem:[#allocation3 + $0x288] sm:$0xff]
    %v170 = vld [vmem:[#allocation3 + $0x290] sm:$0xff]
    %v171 = vld [vmem:[#allocation3 + $0x298] sm:$0xff]
    %v172 = vld [vmem:[#allocation3 + $0x2a0] sm:$0xff]
    %v173 = vld [vmem:[#allocation3 + $0x2a8] sm:$0xff]
    %v174 = vld [vmem:[#allocation3 + $0x2b0] sm:$0xff]
    %v175 = vld [vmem:[#allocation3 + $0x2b8] sm:$0xff]
    %v176 = vld [vmem:[#allocation3 + $0x2c0] sm:$0xff]
    %v177 = vld [vmem:[#allocation3 + $0x2c8] sm:$0xff]
    %v178 = vld [vmem:[#allocation3 + $0x2d0] sm:$0xff]
    %v179 = vld [vmem:[#allocation3 + $0x2d8] sm:$0xff]
    %v180 = vld [vmem:[#allocation3 + $0x2e0] sm:$0xff]
    %v181 = vld [vmem:[#allocation3 + $0x2e8] sm:$0xff]
    %v182 = vld [vmem:[#allocation3 + $0x2f0] sm:$0xff]
    %v183 = vld [vmem:[#allocation3 + $0x2f8] sm:$0xff]
    %v184 = vld [vmem:[#allocation3 + $0x300] sm:$0xff]
    %v185 = vld [vmem:[#allocation3 + $0x308] sm:$0xff]
    %v186 = vld [vmem:[#allocation3 + $0x310] sm:$0xff]
    %v187 = vld [vmem:[#allocation3 + $0x318] sm:$0xff]
    %v188 = vld [vmem:[#allocation3 + $0x320] sm:$0xff]
    %v189 = vld [vmem:[#allocation3 + $0x328] sm:$0xff]
    %v190 = vld [vmem:[#allocation3 + $0x330] sm:$0xff]
    %v191 = vld [vmem:[#allocation3 + $0x338] sm:$0xff]
    %v192 = vld [vmem:[#allocation3 + $0x340] sm:$0xff]
    %v193 = vld [vmem:[#allocation3 + $0x348] sm:$0xff]
    %v194 = vld [vmem:[#allocation3 + $0x350] sm:$0xff]
    %v195 = vld [vmem:[#allocation3 + $0x358] sm:$0xff]
    %v196 = vld [vmem:[#allocation3 + $0x360] sm:$0xff]
    %v197 = vld [vmem:[#allocation3 + $0x368] sm:$0xff]
    %v198 = vld [vmem:[#allocation3 + $0x370] sm:$0xff]
    %v199 = vld [vmem:[#allocation3 + $0x378] sm:$0xff]
    %v200 = vld [vmem:[#allocation3 + $0x380] sm:$0xff]
    %v201 = vld [vmem:[#allocation3 + $0x388] sm:$0xff]
    %v202 = vld [vmem:[#allocation3 + $0x390] sm:$0xff]
    %v203 = vld [vmem:[#allocation3 + $0x398] sm:$0xff]
    %v204 = vld [vmem:[#allocation3 + $0x3a0] sm:$0xff]
    %v205 = vld [vmem:[#allocation3 + $0x3a8] sm:$0xff]
    %v206 = vld [vmem:[#allocation3 + $0x3b0] sm:$0xff]
    %v207 = vld [vmem:[#allocation3 + $0x3b8] sm:$0xff]
    %v208 = vld [vmem:[#allocation3 + $0x3c0] sm:$0xff]
    %v209 = vld [vmem:[#allocation3 + $0x3c8] sm:$0xff]
    %v210 = vld [vmem:[#allocation3 + $0x3d0] sm:$0xff]
    %v211 = vld [vmem:[#allocation3 + $0x3d8] sm:$0xff]
    %v212 = vld [vmem:[#allocation3 + $0x3e0] sm:$0xff]
    %v213 = vld [vmem:[#allocation3 + $0x3e8] sm:$0xff]
    %v214 = vld [vmem:[#allocation3 + $0x3f0] sm:$0xff]
    %v215 = vld [vmem:[#allocation3 + $0x3f8] sm:$0xff]
    %v216 = vld [vmem:[#allocation3 + $0x400] sm:$0xff]
    %v217 = vld [vmem:[#allocation3 + $0x408] sm:$0xff]
    %v218 = vld [vmem:[#allocation3 + $0x410] sm:$0xff]
    %v219 = vld [vmem:[#allocation3 + $0x418] sm:$0xff]
    %v220 = vld [vmem:[#allocation3 + $0x420] sm:$0xff]
    %v221 = vld [vmem:[#allocation3 + $0x428] sm:$0xff]
    %v222 = vld [vmem:[#allocation3 + $0x430] sm:$0xff]
    %v223 = vld [vmem:[#allocation3 + $0x438] sm:$0xff]
    %v224 = vld [vmem:[#allocation3 + $0x440] sm:$0xff]
    %v225 = vld [vmem:[#allocation3 + $0x448] sm:$0xff]
    %v226 = vld [vmem:[#allocation3 + $0x450] sm:$0xff]
    %v227 = vld [vmem:[#allocation3 + $0x458] sm:$0xff]
    %v228 = vld [vmem:[#allocation3 + $0x460] sm:$0xff]
    %v229 = vld [vmem:[#allocation3 + $0x468] sm:$0xff]
    %v230 = vld [vmem:[#allocation3 + $0x470] sm:$0xff]
    %v231 = vld [vmem:[#allocation3 + $0x478] sm:$0xff]
    %v232 = vld [vmem:[#allocation3 + $0x480] sm:$0xff]
    %v233 = vld [vmem:[#allocation3 + $0x488] sm:$0xff]
    %v234 = vld [vmem:[#allocation3 + $0x490] sm:$0xff]
    %v235 = vld [vmem:[#allocation3 + $0x498] sm:$0xff]
    %v236 = vld [vmem:[#allocation3 + $0x4a0] sm:$0xf]
    %v237 = vld [vmem:[#allocation3 + $0x4a8] sm:$0xf]
    %v238 = vld [vmem:[#allocation3 + $0x4b0] sm:$0xf]
    %v239 = vld [vmem:[#allocation3 + $0x4b8] sm:$0xf]
    %v240 = vld [vmem:[%s3] sm:$0xf]
    %v242 = vlaneseq
    %v243 = vshrl.u32 %v242, 7
    %v244 = vsub.s32 0, %v243
    %v245 = vrot.slane %v240, %v244
    %v246 = vlaneseq
    %v247 = vshrl.u32 %v246, 7
    %v248 = vsub.s32 1, %v247
    %v249 = vrot.slane %v240, %v248
    %v250 = vlaneseq
    %v251 = vshrl.u32 %v250, 7
    %v252 = vsub.s32 2, %v251
    %v253 = vrot.slane %v240, %v252
    %v254 = vlaneseq
    %v255 = vshrl.u32 %v254, 7
    %v256 = vsub.s32 3, %v255
    %v257 = vrot.slane %v240, %v256
    %vm262 = vcmask 359424
    %v264 = vsel %vm262, %v66, 0
    %v267 = vsel %vm262, %v69, 0
    %v270 = vsel %vm262, %v72, 0
    %v273 = vsel %vm262, %v75, 0
    %v276 = vsel %vm262, %v78, 0
    %v279 = vsel %vm262, %v81, 0
    %v282 = vsel %vm262, %v84, 0
    %v285 = vsel %vm262, %v87, 0
    %vm287 = vcmask 1043456
    %v289 = vsel %vm287, %v236, 0
    %v292 = vsel %vm287, %v237, 0
    %v295 = vsel %vm287, %v238, 0
    %v298 = vsel %vm287, %v239, 0
    %300 = vmatprep.subr.mxu0 %v149
    %301 = vmatpush1.msra.mxu0 %v148
    %302 = vmatprep.subr.mxu0 %v145
    %303 = vmatpush1.msra.mxu0 %v144
    %304 = vmatprep.subr.mxu0 %v141
    %305 = vmatpush1.msra.mxu0 %v140
    %306 = vmatprep.subr.mxu0 %v137
    %307 = vmatpush1.msra.mxu0 %v136
    %308 = vmatprep.subr.mxu0 %v133
    %309 = vmatpush1.msra.mxu0 %v132
    %310 = vmatprep.subr.mxu0 %v129
    %311 = vmatpush1.msra.mxu0 %v128
    %312 = vmatprep.subr.mxu0 %v125
    %313 = vmatpush1.msra.mxu0 %v124
    %314 = vmatprep.subr.mxu0 %v121
    %315 = vmatpush1.msra.mxu0 %v120
    %316 = vmatprep.subr.mxu0 %v117
    %317 = vmatpush1.msra.mxu0 %v116
    %318 = vmatprep.subr.mxu0 %v113
    %319 = vmatpush1.msra.mxu0 %v112
    %320 = vmatprep.subr.mxu0 %v109
    %321 = vmatpush1.msra.mxu0 %v108
    %322 = vmatprep.subr.mxu0 %v105
    %323 = vmatpush1.msra.mxu0 %v104
    %324 = vmatprep.subr.mxu0 %v101
    %325 = vmatpush1.msra.mxu0 %v100
    %326 = vmatprep.subr.mxu0 %v97
    %327 = vmatpush1.msra.mxu0 %v96
    %328 = vmatprep.subr.mxu0 %v93
    %329 = vmatpush1.msra.mxu0 %v92
    %330 = vmatprep.subr.mxu0 %v89
    %331 = vmatpush1.msra.mxu0 %v88
    %332 = vmatprep.subr.mxu0 %v213
    %333 = vmatpush2.msra.mxu0 %v212
    %334 = vmatprep.subr.mxu0 %v209
    %335 = vmatpush2.msra.mxu0 %v208
    %336 = vmatprep.subr.mxu0 %v205
    %337 = vmatpush2.msra.mxu0 %v204
    %338 = vmatprep.subr.mxu0 %v201
    %339 = vmatpush2.msra.mxu0 %v200
    %340 = vmatprep.subr.mxu0 %v197
    %341 = vmatpush2.msra.mxu0 %v196
    %342 = vmatprep.subr.mxu0 %v193
    %343 = vmatpush2.msra.mxu0 %v192
    %344 = vmatprep.subr.mxu0 %v189
    %345 = vmatpush2.msra.mxu0 %v188
    %346 = vmatprep.subr.mxu0 %v185
    %347 = vmatpush2.msra.mxu0 %v184
    %348 = vmatprep.subr.mxu0 %v181
    %349 = vmatpush2.msra.mxu0 %v180
    %350 = vmatprep.subr.mxu0 %v177
    %351 = vmatpush2.msra.mxu0 %v176
    %352 = vmatprep.subr.mxu0 %v173
    %353 = vmatpush2.msra.mxu0 %v172
    %354 = vmatprep.subr.mxu0 %v169
    %355 = vmatpush2.msra.mxu0 %v168
    %356 = vmatprep.subr.mxu0 %v165
    %357 = vmatpush2.msra.mxu0 %v164
    %358 = vmatprep.subr.mxu0 %v161
    %359 = vmatpush2.msra.mxu0 %v160
    %360 = vmatprep.subr.mxu0 %v157
    %361 = vmatpush2.msra.mxu0 %v156
    %362 = vmatprep.subr.mxu0 %v153
    %363 = vmatpush2.msra.mxu0 %v152
    %364 = vmatprep.mubr.f32.mxu0 %v65
    %365 = vmatmul.mubr.f32.gmra.mxu0 %v64
    %v366 = vpop.f32.mrf.mxu0
    %v367 = vadd.f32 %v245, %v366
    %v368 = vpop.f32.mrf.mxu0
    %v369 = vadd.f32 %v249, %v368
    %370 = vmatprep.mubr.f32.mxu0 %v68
    %371 = vmatmul.mubr.f32.gmra.mxu0 %v67
    %v372 = vpop.f32.mrf.mxu0
    %v373 = vadd.f32 %v245, %v372
    %v374 = vpop.f32.mrf.mxu0
    %v375 = vadd.f32 %v249, %v374
    %376 = vmatprep.mubr.f32.mxu0 %v71
    %377 = vmatmul.mubr.f32.gmra.mxu0 %v70
    %v378 = vpop.f32.mrf.mxu0
    %v379 = vadd.f32 %v245, %v378
    %v380 = vpop.f32.mrf.mxu0
    %v381 = vadd.f32 %v249, %v380
    %382 = vmatprep.mubr.f32.mxu0 %v74
    %383 = vmatmul.mubr.f32.gmra.mxu0 %v73
    %v384 = vpop.f32.mrf.mxu0
    %v385 = vadd.f32 %v245, %v384
    %v386 = vpop.f32.mrf.mxu0
    %v387 = vadd.f32 %v249, %v386
    %388 = vmatprep.mubr.f32.mxu0 %v77
    %389 = vmatmul.mubr.f32.gmra.mxu0 %v76
    %v390 = vpop.f32.mrf.mxu0
    %v391 = vadd.f32 %v245, %v390
    %v392 = vpop.f32.mrf.mxu0
    %v393 = vadd.f32 %v249, %v392
    %394 = vmatprep.mubr.f32.mxu0 %v80
    %395 = vmatmul.mubr.f32.gmra.mxu0 %v79
    %v396 = vpop.f32.mrf.mxu0
    %v397 = vadd.f32 %v245, %v396
    %v398 = vpop.f32.mrf.mxu0
    %v399 = vadd.f32 %v249, %v398
    %400 = vmatprep.mubr.f32.mxu0 %v83
    %401 = vmatmul.mubr.f32.gmra.mxu0 %v82
    %v402 = vpop.f32.mrf.mxu0
    %v403 = vadd.f32 %v245, %v402
    %v404 = vpop.f32.mrf.mxu0
    %v405 = vadd.f32 %v249, %v404
    %406 = vmatprep.mubr.f32.mxu0 %v86
    %407 = vmatmul.mubr.f32.gmra.mxu0 %v85
    %v408 = vpop.f32.mrf.mxu0
    %v409 = vadd.f32 %v245, %v408
    %v410 = vpop.f32.mrf.mxu0
    %v411 = vadd.f32 %v249, %v410
    %412 = vdwg.mxu0
    %413 = vmatprep.subr.mxu0 0.0
    %414 = vmatpush1.msra.mxu0 0.0
    %415 = vmatprep.subr.mxu0 0.0
    %416 = vmatpush1.msra.mxu0 0.0
    %417 = vmatprep.subr.mxu0 0.0
    %418 = vmatpush1.msra.mxu0 0.0
    %419 = vmatprep.subr.mxu0 0.0
    %420 = vmatpush1.msra.mxu0 0.0
    %421 = vmatprep.subr.mxu0 0.0
    %422 = vmatpush1.msra.mxu0 0.0
    %423 = vmatprep.subr.mxu0 0.0
    %424 = vmatpush1.msra.mxu0 0.0
    %425 = vmatprep.subr.mxu0 0.0
    %426 = vmatpush1.msra.mxu0 0.0
    %427 = vmatprep.subr.mxu0 0.0
    %428 = vmatpush1.msra.mxu0 0.0
    %429 = vmatprep.subr.mxu0 0.0
    %430 = vmatpush1.msra.mxu0 0.0
    %431 = vmatprep.subr.mxu0 0.0
    %432 = vmatpush1.msra.mxu0 0.0
    %433 = vmatprep.subr.mxu0 %v292
    %434 = vmatpush1.msra.mxu0 %v289
    %435 = vmatprep.subr.mxu0 %v233
    %436 = vmatpush1.msra.mxu0 %v232
    %437 = vmatprep.subr.mxu0 %v229
    %438 = vmatpush1.msra.mxu0 %v228
    %439 = vmatprep.subr.mxu0 %v225
    %440 = vmatpush1.msra.mxu0 %v224
    %441 = vmatprep.subr.mxu0 %v221
    %442 = vmatpush1.msra.mxu0 %v220
    %443 = vmatprep.subr.mxu0 %v217
    %444 = vmatpush1.msra.mxu0 %v216
    %445 = vmatprep.subr.mxu0 0.0
    %446 = vmatpush2.msra.mxu0 0.0
    %447 = vmatprep.subr.mxu0 0.0
    %448 = vmatpush2.msra.mxu0 0.0
    %449 = vmatprep.subr.mxu0 0.0
    %450 = vmatpush2.msra.mxu0 0.0
    %451 = vmatprep.subr.mxu0 0.0
    %452 = vmatpush2.msra.mxu0 0.0
    %453 = vmatprep.subr.mxu0 0.0
    %454 = vmatpush2.msra.mxu0 0.0
    %455 = vmatprep.subr.mxu0 0.0
    %456 = vmatpush2.msra.mxu0 0.0
    %457 = vmatprep.subr.mxu0 0.0
    %458 = vmatpush2.msra.mxu0 0.0
    %459 = vmatprep.subr.mxu0 0.0
    %460 = vmatpush2.msra.mxu0 0.0
    %461 = vmatprep.subr.mxu0 0.0
    %462 = vmatpush2.msra.mxu0 0.0
    %463 = vmatprep.subr.mxu0 0.0
    %464 = vmatpush2.msra.mxu0 0.0
    %465 = vmatprep.subr.mxu0 0.0
    %466 = vmatpush2.msra.mxu0 0.0
    %467 = vmatprep.subr.mxu0 0.0
    %468 = vmatpush2.msra.mxu0 0.0
    %469 = vmatprep.subr.mxu0 0.0
    %470 = vmatpush2.msra.mxu0 0.0
    %471 = vmatprep.subr.mxu0 0.0
    %472 = vmatpush2.msra.mxu0 0.0
    %473 = vmatprep.subr.mxu0 0.0
    %474 = vmatpush2.msra.mxu0 0.0
    %475 = vmatprep.subr.mxu0 0.0
    %476 = vmatpush2.msra.mxu0 0.0
    %477 = vmatprep.mubr.f32.mxu0 0.0
    %478 = vmatmul.mubr.f32.gmra.mxu0 %v264
    %v479 = vpop.f32.mrf.mxu0
    %v480 = vadd.f32 %v367, %v479
    %v481 = vpop.f32.mrf.mxu0
    %v482 = vadd.f32 %v369, %v481
    %483 = vmatprep.mubr.f32.mxu0 0.0
    %484 = vmatmul.mubr.f32.gmra.mxu0 %v267
    %v485 = vpop.f32.mrf.mxu0
    %v486 = vadd.f32 %v373, %v485
    %v487 = vpop.f32.mrf.mxu0
    %v488 = vadd.f32 %v375, %v487
    %489 = vmatprep.mubr.f32.mxu0 0.0
    %490 = vmatmul.mubr.f32.gmra.mxu0 %v270
    %v491 = vpop.f32.mrf.mxu0
    %v492 = vadd.f32 %v379, %v491
    %v493 = vpop.f32.mrf.mxu0
    %v494 = vadd.f32 %v381, %v493
    %495 = vmatprep.mubr.f32.mxu0 0.0
    %496 = vmatmul.mubr.f32.gmra.mxu0 %v273
    %v497 = vpop.f32.mrf.mxu0
    %v498 = vadd.f32 %v385, %v497
    %v499 = vpop.f32.mrf.mxu0
    %v500 = vadd.f32 %v387, %v499
    %501 = vmatprep.mubr.f32.mxu0 0.0
    %502 = vmatmul.mubr.f32.gmra.mxu0 %v276
    %v503 = vpop.f32.mrf.mxu0
    %v504 = vadd.f32 %v391, %v503
    %v505 = vpop.f32.mrf.mxu0
    %v506 = vadd.f32 %v393, %v505
    %507 = vmatprep.mubr.f32.mxu0 0.0
    %508 = vmatmul.mubr.f32.gmra.mxu0 %v279
    %v509 = vpop.f32.mrf.mxu0
    %v510 = vadd.f32 %v397, %v509
    %v511 = vpop.f32.mrf.mxu0
    %v512 = vadd.f32 %v399, %v511
    %513 = vmatprep.mubr.f32.mxu0 0.0
    %514 = vmatmul.mubr.f32.gmra.mxu0 %v282
    %v515 = vpop.f32.mrf.mxu0
    %v516 = vadd.f32 %v403, %v515
    %v517 = vpop.f32.mrf.mxu0
    %v518 = vadd.f32 %v405, %v517
    %519 = vmatprep.mubr.f32.mxu0 0.0
    %520 = vmatmul.mubr.f32.gmra.mxu0 %v285
    %v521 = vpop.f32.mrf.mxu0
    %v522 = vadd.f32 %v409, %v521
    %v523 = vpop.f32.mrf.mxu0
    %v524 = vadd.f32 %v411, %v523
    %525 = vdwg.mxu0
    %526 = vmatprep.subr.mxu0 %v151
    %527 = vmatpush1.msra.mxu0 %v150
    %528 = vmatprep.subr.mxu0 %v147
    %529 = vmatpush1.msra.mxu0 %v146
    %530 = vmatprep.subr.mxu0 %v143
    %531 = vmatpush1.msra.mxu0 %v142
    %532 = vmatprep.subr.mxu0 %v139
    %533 = vmatpush1.msra.mxu0 %v138
    %534 = vmatprep.subr.mxu0 %v135
    %535 = vmatpush1.msra.mxu0 %v134
    %536 = vmatprep.subr.mxu0 %v131
    %537 = vmatpush1.msra.mxu0 %v130
    %538 = vmatprep.subr.mxu0 %v127
    %539 = vmatpush1.msra.mxu0 %v126
    %540 = vmatprep.subr.mxu0 %v123
    %541 = vmatpush1.msra.mxu0 %v122
    %542 = vmatprep.subr.mxu0 %v119
    %543 = vmatpush1.msra.mxu0 %v118
    %544 = vmatprep.subr.mxu0 %v115
    %545 = vmatpush1.msra.mxu0 %v114
    %546 = vmatprep.subr.mxu0 %v111
    %547 = vmatpush1.msra.mxu0 %v110
    %548 = vmatprep.subr.mxu0 %v107
    %549 = vmatpush1.msra.mxu0 %v106
    %550 = vmatprep.subr.mxu0 %v103
    %551 = vmatpush1.msra.mxu0 %v102
    %552 = vmatprep.subr.mxu0 %v99
    %553 = vmatpush1.msra.mxu0 %v98
    %554 = vmatprep.subr.mxu0 %v95
    %555 = vmatpush1.msra.mxu0 %v94
    %556 = vmatprep.subr.mxu0 %v91
    %557 = vmatpush1.msra.mxu0 %v90
    %558 = vmatprep.subr.mxu0 %v215
    %559 = vmatpush2.msra.mxu0 %v214
    %560 = vmatprep.subr.mxu0 %v211
    %561 = vmatpush2.msra.mxu0 %v210
    %562 = vmatprep.subr.mxu0 %v207
    %563 = vmatpush2.msra.mxu0 %v206
    %564 = vmatprep.subr.mxu0 %v203
    %565 = vmatpush2.msra.mxu0 %v202
    %566 = vmatprep.subr.mxu0 %v199
    %567 = vmatpush2.msra.mxu0 %v198
    %568 = vmatprep.subr.mxu0 %v195
    %569 = vmatpush2.msra.mxu0 %v194
    %570 = vmatprep.subr.mxu0 %v191
    %571 = vmatpush2.msra.mxu0 %v190
    %572 = vmatprep.subr.mxu0 %v187
    %573 = vmatpush2.msra.mxu0 %v186
    %574 = vmatprep.subr.mxu0 %v183
    %575 = vmatpush2.msra.mxu0 %v182
    %576 = vmatprep.subr.mxu0 %v179
    %577 = vmatpush2.msra.mxu0 %v178
    %578 = vmatprep.subr.mxu0 %v175
    %579 = vmatpush2.msra.mxu0 %v174
    %580 = vmatprep.subr.mxu0 %v171
    %581 = vmatpush2.msra.mxu0 %v170
    %582 = vmatprep.subr.mxu0 %v167
    %583 = vmatpush2.msra.mxu0 %v166
    %584 = vmatprep.subr.mxu0 %v163
    %585 = vmatpush2.msra.mxu0 %v162
    %586 = vmatprep.subr.mxu0 %v159
    %587 = vmatpush2.msra.mxu0 %v158
    %588 = vmatprep.subr.mxu0 %v155
    %589 = vmatpush2.msra.mxu0 %v154
    %590 = vmatprep.mubr.f32.mxu0 %v65
    %591 = vmatmul.mubr.f32.gmra.mxu0 %v64
    %v592 = vpop.f32.mrf.mxu0
    %v593 = vadd.f32 %v253, %v592
    %v594 = vpop.f32.mrf.mxu0
    %v595 = vadd.f32 %v257, %v594
    %596 = vmatprep.mubr.f32.mxu0 %v68
    %597 = vmatmul.mubr.f32.gmra.mxu0 %v67
    %v598 = vpop.f32.mrf.mxu0
    %v599 = vadd.f32 %v253, %v598
    %v600 = vpop.f32.mrf.mxu0
    %v601 = vadd.f32 %v257, %v600
    %602 = vmatprep.mubr.f32.mxu0 %v71
    %603 = vmatmul.mubr.f32.gmra.mxu0 %v70
    %v604 = vpop.f32.mrf.mxu0
    %v605 = vadd.f32 %v253, %v604
    %v606 = vpop.f32.mrf.mxu0
    %v607 = vadd.f32 %v257, %v606
    %608 = vmatprep.mubr.f32.mxu0 %v74
    %609 = vmatmul.mubr.f32.gmra.mxu0 %v73
    %v610 = vpop.f32.mrf.mxu0
    %v611 = vadd.f32 %v253, %v610
    %v612 = vpop.f32.mrf.mxu0
    %v613 = vadd.f32 %v257, %v612
    %614 = vmatprep.mubr.f32.mxu0 %v77
    %615 = vmatmul.mubr.f32.gmra.mxu0 %v76
    %v616 = vpop.f32.mrf.mxu0
    %v617 = vadd.f32 %v253, %v616
    %v618 = vpop.f32.mrf.mxu0
    %v619 = vadd.f32 %v257, %v618
    %620 = vmatprep.mubr.f32.mxu0 %v80
    %621 = vmatmul.mubr.f32.gmra.mxu0 %v79
    %v622 = vpop.f32.mrf.mxu0
    %v623 = vadd.f32 %v253, %v622
    %v624 = vpop.f32.mrf.mxu0
    %v625 = vadd.f32 %v257, %v624
    %626 = vmatprep.mubr.f32.mxu0 %v83
    %627 = vmatmul.mubr.f32.gmra.mxu0 %v82
    %v628 = vpop.f32.mrf.mxu0
    %v629 = vadd.f32 %v253, %v628
    %v630 = vpop.f32.mrf.mxu0
    %v631 = vadd.f32 %v257, %v630
    %632 = vmatprep.mubr.f32.mxu0 %v86
    %633 = vmatmul.mubr.f32.gmra.mxu0 %v85
    %v634 = vpop.f32.mrf.mxu0
    %v635 = vadd.f32 %v253, %v634
    %v636 = vpop.f32.mrf.mxu0
    %v637 = vadd.f32 %v257, %v636
    %638 = vdwg.mxu0
    %639 = vmatprep.subr.mxu0 0.0
    %640 = vmatpush1.msra.mxu0 0.0
    %641 = vmatprep.subr.mxu0 0.0
    %642 = vmatpush1.msra.mxu0 0.0
    %643 = vmatprep.subr.mxu0 0.0
    %644 = vmatpush1.msra.mxu0 0.0
    %645 = vmatprep.subr.mxu0 0.0
    %646 = vmatpush1.msra.mxu0 0.0
    %647 = vmatprep.subr.mxu0 0.0
    %648 = vmatpush1.msra.mxu0 0.0
    %649 = vmatprep.subr.mxu0 0.0
    %650 = vmatpush1.msra.mxu0 0.0
    %651 = vmatprep.subr.mxu0 0.0
    %652 = vmatpush1.msra.mxu0 0.0
    %653 = vmatprep.subr.mxu0 0.0
    %654 = vmatpush1.msra.mxu0 0.0
    %655 = vmatprep.subr.mxu0 0.0
    %656 = vmatpush1.msra.mxu0 0.0
    %657 = vmatprep.subr.mxu0 0.0
    %658 = vmatpush1.msra.mxu0 0.0
    %659 = vmatprep.subr.mxu0 %v298
    %660 = vmatpush1.msra.mxu0 %v295
    %661 = vmatprep.subr.mxu0 %v235
    %662 = vmatpush1.msra.mxu0 %v234
    %663 = vmatprep.subr.mxu0 %v231
    %664 = vmatpush1.msra.mxu0 %v230
    %665 = vmatprep.subr.mxu0 %v227
    %666 = vmatpush1.msra.mxu0 %v226
    %667 = vmatprep.subr.mxu0 %v223
    %668 = vmatpush1.msra.mxu0 %v222
    %669 = vmatprep.subr.mxu0 %v219
    %670 = vmatpush1.msra.mxu0 %v218
    %671 = vmatprep.subr.mxu0 0.0
    %672 = vmatpush2.msra.mxu0 0.0
    %673 = vmatprep.subr.mxu0 0.0
    %674 = vmatpush2.msra.mxu0 0.0
    %675 = vmatprep.subr.mxu0 0.0
    %676 = vmatpush2.msra.mxu0 0.0
    %677 = vmatprep.subr.mxu0 0.0
    %678 = vmatpush2.msra.mxu0 0.0
    %679 = vmatprep.subr.mxu0 0.0
    %680 = vmatpush2.msra.mxu0 0.0
    %681 = vmatprep.subr.mxu0 0.0
    %682 = vmatpush2.msra.mxu0 0.0
    %683 = vmatprep.subr.mxu0 0.0
    %684 = vmatpush2.msra.mxu0 0.0
    %685 = vmatprep.subr.mxu0 0.0
    %686 = vmatpush2.msra.mxu0 0.0
    %687 = vmatprep.subr.mxu0 0.0
    %688 = vmatpush2.msra.mxu0 0.0
    %689 = vmatprep.subr.mxu0 0.0
    %690 = vmatpush2.msra.mxu0 0.0
    %691 = vmatprep.subr.mxu0 0.0
    %692 = vmatpush2.msra.mxu0 0.0
    %693 = vmatprep.subr.mxu0 0.0
    %694 = vmatpush2.msra.mxu0 0.0
    %695 = vmatprep.subr.mxu0 0.0
    %696 = vmatpush2.msra.mxu0 0.0
    %697 = vmatprep.subr.mxu0 0.0
    %698 = vmatpush2.msra.mxu0 0.0
    %699 = vmatprep.subr.mxu0 0.0
    %700 = vmatpush2.msra.mxu0 0.0
    %701 = vmatprep.subr.mxu0 0.0
    %702 = vmatpush2.msra.mxu0 0.0
    %703 = vmatprep.mubr.f32.mxu0 0.0
    %704 = vmatmul.mubr.f32.gmra.mxu0 %v264
    %v705 = vpop.f32.mrf.mxu0
    %v706 = vadd.f32 %v593, %v705
    %v707 = vpop.f32.mrf.mxu0
    %v708 = vadd.f32 %v595, %v707
    %709 = vmatprep.mubr.f32.mxu0 0.0
    %710 = vmatmul.mubr.f32.gmra.mxu0 %v267
    %v711 = vpop.f32.mrf.mxu0
    %v712 = vadd.f32 %v599, %v711
    %v713 = vpop.f32.mrf.mxu0
    %v714 = vadd.f32 %v601, %v713
    %715 = vmatprep.mubr.f32.mxu0 0.0
    %716 = vmatmul.mubr.f32.gmra.mxu0 %v270
    %v717 = vpop.f32.mrf.mxu0
    %v718 = vadd.f32 %v605, %v717
    %v719 = vpop.f32.mrf.mxu0
    %v720 = vadd.f32 %v607, %v719
    %721 = vmatprep.mubr.f32.mxu0 0.0
    %722 = vmatmul.mubr.f32.gmra.mxu0 %v273
    %v723 = vpop.f32.mrf.mxu0
    %v724 = vadd.f32 %v611, %v723
    %v725 = vpop.f32.mrf.mxu0
    %v726 = vadd.f32 %v613, %v725
    %727 = vmatprep.mubr.f32.mxu0 0.0
    %728 = vmatmul.mubr.f32.gmra.mxu0 %v276
    %v729 = vpop.f32.mrf.mxu0
    %v730 = vadd.f32 %v617, %v729
    %v731 = vpop.f32.mrf.mxu0
    %v732 = vadd.f32 %v619, %v731
    %733 = vmatprep.mubr.f32.mxu0 0.0
    %734 = vmatmul.mubr.f32.gmra.mxu0 %v279
    %v735 = vpop.f32.mrf.mxu0
    %v736 = vadd.f32 %v623, %v735
    %v737 = vpop.f32.mrf.mxu0
    %v738 = vadd.f32 %v625, %v737
    %739 = vmatprep.mubr.f32.mxu0 0.0
    %740 = vmatmul.mubr.f32.gmra.mxu0 %v282
    %v741 = vpop.f32.mrf.mxu0
    %v742 = vadd.f32 %v629, %v741
    %v743 = vpop.f32.mrf.mxu0
    %v744 = vadd.f32 %v631, %v743
    %745 = vmatprep.mubr.f32.mxu0 0.0
    %746 = vmatmul.mubr.f32.gmra.mxu0 %v285
    %v747 = vpop.f32.mrf.mxu0
    %v748 = vadd.f32 %v635, %v747
    %v749 = vpop.f32.mrf.mxu0
    %v750 = vadd.f32 %v637, %v749
    %751 = vdwg.mxu0
    %752 = vst [vmem:[#allocation2] sm:$0xff] %v480
    %753 = vst [vmem:[#allocation2 + $0x8] sm:$0xff] %v482
    %754 = vst [vmem:[#allocation2 + $0x10] sm:$0xff] %v706
    %755 = vst [vmem:[#allocation2 + $0x18] sm:$0xff] %v708
    %756 = vst [vmem:[#allocation2 + $0x20] sm:$0xff] %v486
    %757 = vst [vmem:[#allocation2 + $0x28] sm:$0xff] %v488
    %758 = vst [vmem:[#allocation2 + $0x30] sm:$0xff] %v712
    %759 = vst [vmem:[#allocation2 + $0x38] sm:$0xff] %v714
    %760 = vst [vmem:[#allocation2 + $0x40] sm:$0xff] %v492
    %761 = vst [vmem:[#allocation2 + $0x48] sm:$0xff] %v494
    %762 = vst [vmem:[#allocation2 + $0x50] sm:$0xff] %v718
    %763 = vst [vmem:[#allocation2 + $0x58] sm:$0xff] %v720
    %764 = vst [vmem:[#allocation2 + $0x60] sm:$0xff] %v498
    %765 = vst [vmem:[#allocation2 + $0x68] sm:$0xff] %v500
    %766 = vst [vmem:[#allocation2 + $0x70] sm:$0xff] %v724
    %767 = vst [vmem:[#allocation2 + $0x78] sm:$0xff] %v726
    %768 = vst [vmem:[#allocation2 + $0x80] sm:$0xff] %v504
    %769 = vst [vmem:[#allocation2 + $0x88] sm:$0xff] %v506
    %770 = vst [vmem:[#allocation2 + $0x90] sm:$0xff] %v730
    %771 = vst [vmem:[#allocation2 + $0x98] sm:$0xff] %v732
    %772 = vst [vmem:[#allocation2 + $0xa0] sm:$0xff] %v510
    %773 = vst [vmem:[#allocation2 + $0xa8] sm:$0xff] %v512
    %774 = vst [vmem:[#allocation2 + $0xb0] sm:$0xff] %v736
    %775 = vst [vmem:[#allocation2 + $0xb8] sm:$0xff] %v738
    %776 = vst [vmem:[#allocation2 + $0xc0] sm:$0xff] %v516
    %777 = vst [vmem:[#allocation2 + $0xc8] sm:$0xff] %v518
    %778 = vst [vmem:[#allocation2 + $0xd0] sm:$0xff] %v742
    %779 = vst [vmem:[#allocation2 + $0xd8] sm:$0xff] %v744
    %780 = vst [vmem:[#allocation2 + $0xe0] sm:$0xff] %v522
    %781 = vst [vmem:[#allocation2 + $0xe8] sm:$0xff] %v524
    %782 = vst [vmem:[#allocation2 + $0xf0] sm:$0xff] %v748
    %783 = vst [vmem:[#allocation2 + $0xf8] sm:$0xff] %v750
    %v784 = vld [vmem:[#allocation2] sm:$0xff]
    %v785 = vld [vmem:[#allocation2 + $0x8] sm:$0xff]
    %v786 = vld [vmem:[#allocation2 + $0x10] sm:$0xff]
    %v787 = vld [vmem:[#allocation2 + $0x18] sm:$0xff]
    %v788 = vld [vmem:[#allocation6] sm:$0xff]
    %v789 = vld [vmem:[#allocation6 + $0x8] sm:$0xff]
    %v790 = vld [vmem:[#allocation6 + $0x10] sm:$0xff]
    %v791 = vld [vmem:[#allocation6 + $0x18] sm:$0xff]
    %v792 = vld [vmem:[#allocation6 + $0x20] sm:$0xff]
    %v793 = vld [vmem:[#allocation6 + $0x28] sm:$0xff]
    %v794 = vld [vmem:[#allocation6 + $0x30] sm:$0xff]
    %v795 = vld [vmem:[#allocation6 + $0x38] sm:$0xff]
    %v796 = vld [vmem:[#allocation6 + $0x40] sm:$0xff]
    %v797 = vld [vmem:[#allocation6 + $0x48] sm:$0xff]
    %v798 = vld [vmem:[#allocation6 + $0x50] sm:$0xff]
    %v799 = vld [vmem:[#allocation6 + $0x58] sm:$0xff]
    %v800 = vld [vmem:[#allocation6 + $0x60] sm:$0xff]
    %v801 = vld [vmem:[#allocation6 + $0x68] sm:$0xff]
    %v802 = vld [vmem:[#allocation6 + $0x70] sm:$0xff]
    %v803 = vld [vmem:[#allocation6 + $0x78] sm:$0xff]
    %v804 = vld [vmem:[#allocation6 + $0x80] sm:$0xff]
    %v805 = vld [vmem:[#allocation6 + $0x88] sm:$0xff]
    %v806 = vld [vmem:[#allocation6 + $0x90] sm:$0xff]
    %v807 = vld [vmem:[#allocation6 + $0x98] sm:$0xff]
    %v808 = vld [vmem:[#allocation6 + $0xa0] sm:$0xff]
    %v809 = vld [vmem:[#allocation6 + $0xa8] sm:$0xff]
    %v810 = vld [vmem:[#allocation6 + $0xb0] sm:$0xff]
    %v811 = vld [vmem:[#allocation6 + $0xb8] sm:$0xff]
    %v812 = vld [vmem:[#allocation6 + $0xc0] sm:$0xff]
    %v813 = vld [vmem:[#allocation6 + $0xc8] sm:$0xff]
    %v814 = vld [vmem:[#allocation6 + $0xd0] sm:$0xff]
    %v815 = vld [vmem:[#allocation6 + $0xd8] sm:$0xff]
    %v816 = vld [vmem:[#allocation6 + $0xe0] sm:$0xff]
    %v817 = vld [vmem:[#allocation6 + $0xe8] sm:$0xff]
    %v818 = vld [vmem:[#allocation6 + $0xf0] sm:$0xff]
    %v819 = vld [vmem:[#allocation6 + $0xf8] sm:$0xff]
    %v820 = vld [vmem:[#allocation6 + $0x100] sm:$0xff]
    %v821 = vld [vmem:[#allocation6 + $0x108] sm:$0xff]
    %v822 = vld [vmem:[#allocation6 + $0x110] sm:$0xff]
    %v823 = vld [vmem:[#allocation6 + $0x118] sm:$0xff]
    %v824 = vld [vmem:[#allocation6 + $0x120] sm:$0xff]
    %v825 = vld [vmem:[#allocation6 + $0x128] sm:$0xff]
    %v826 = vld [vmem:[#allocation6 + $0x130] sm:$0xff]
    %v827 = vld [vmem:[#allocation6 + $0x138] sm:$0xff]
    %v828 = vld [vmem:[#allocation6 + $0x140] sm:$0xff]
    %v829 = vld [vmem:[#allocation6 + $0x148] sm:$0xff]
    %v830 = vld [vmem:[#allocation6 + $0x150] sm:$0xff]
    %v831 = vld [vmem:[#allocation6 + $0x158] sm:$0xff]
    %v832 = vld [vmem:[#allocation6 + $0x160] sm:$0xff]
    %v833 = vld [vmem:[#allocation6 + $0x168] sm:$0xff]
    %v834 = vld [vmem:[#allocation6 + $0x170] sm:$0xff]
    %v835 = vld [vmem:[#allocation6 + $0x178] sm:$0xff]
    %v836 = vld [vmem:[#allocation6 + $0x180] sm:$0xff]
    %v837 = vld [vmem:[#allocation6 + $0x188] sm:$0xff]
    %v838 = vld [vmem:[#allocation6 + $0x190] sm:$0xff]
    %v839 = vld [vmem:[#allocation6 + $0x198] sm:$0xff]
    %v840 = vld [vmem:[#allocation6 + $0x1a0] sm:$0xff]
    %v841 = vld [vmem:[#allocation6 + $0x1a8] sm:$0xff]
    %v842 = vld [vmem:[#allocation6 + $0x1b0] sm:$0xff]
    %v843 = vld [vmem:[#allocation6 + $0x1b8] sm:$0xff]
    %v844 = vld [vmem:[#allocation6 + $0x1c0] sm:$0xff]
    %v845 = vld [vmem:[#allocation6 + $0x1c8] sm:$0xff]
    %v846 = vld [vmem:[#allocation6 + $0x1d0] sm:$0xff]
    %v847 = vld [vmem:[#allocation6 + $0x1d8] sm:$0xff]
    %v848 = vld [vmem:[#allocation6 + $0x1e0] sm:$0xff]
    %v849 = vld [vmem:[#allocation6 + $0x1e8] sm:$0xff]
    %v850 = vld [vmem:[#allocation6 + $0x1f0] sm:$0xff]
    %v851 = vld [vmem:[#allocation6 + $0x1f8] sm:$0xff]
    %852 = vmatprep.subr.mxu0 %v849
    %853 = vmatpush1.msra.mxu0 %v848
    %854 = vmatprep.subr.mxu0 %v845
    %855 = vmatpush1.msra.mxu0 %v844
    %856 = vmatprep.subr.mxu0 %v841
    %857 = vmatpush1.msra.mxu0 %v840
    %858 = vmatprep.subr.mxu0 %v837
    %859 = vmatpush1.msra.mxu0 %v836
    %860 = vmatprep.subr.mxu0 %v833
    %861 = vmatpush1.msra.mxu0 %v832
    %862 = vmatprep.subr.mxu0 %v829
    %863 = vmatpush1.msra.mxu0 %v828
    %864 = vmatprep.subr.mxu0 %v825
    %865 = vmatpush1.msra.mxu0 %v824
    %866 = vmatprep.subr.mxu0 %v821
    %867 = vmatpush1.msra.mxu0 %v820
    %868 = vmatprep.subr.mxu0 %v817
    %869 = vmatpush1.msra.mxu0 %v816
    %870 = vmatprep.subr.mxu0 %v813
    %871 = vmatpush1.msra.mxu0 %v812
    %872 = vmatprep.subr.mxu0 %v809
    %873 = vmatpush1.msra.mxu0 %v808
    %874 = vmatprep.subr.mxu0 %v805
    %875 = vmatpush1.msra.mxu0 %v804
    %876 = vmatprep.subr.mxu0 %v801
    %877 = vmatpush1.msra.mxu0 %v800
    %878 = vmatprep.subr.mxu0 %v797
    %879 = vmatpush1.msra.mxu0 %v796
    %880 = vmatprep.subr.mxu0 %v793
    %881 = vmatpush1.msra.mxu0 %v792
    %882 = vmatprep.subr.mxu0 %v789
    %883 = vmatpush1.msra.mxu0 %v788
    %884 = vmatprep.subr.mxu0 0.0
    %885 = vmatpush2.msra.mxu0 0.0
    %886 = vmatprep.subr.mxu0 0.0
    %887 = vmatpush2.msra.mxu0 0.0
    %888 = vmatprep.subr.mxu0 0.0
    %889 = vmatpush2.msra.mxu0 0.0
    %890 = vmatprep.subr.mxu0 0.0
    %891 = vmatpush2.msra.mxu0 0.0
    %892 = vmatprep.subr.mxu0 0.0
    %893 = vmatpush2.msra.mxu0 0.0
    %894 = vmatprep.subr.mxu0 0.0
    %895 = vmatpush2.msra.mxu0 0.0
    %896 = vmatprep.subr.mxu0 0.0
    %897 = vmatpush2.msra.mxu0 0.0
    %898 = vmatprep.subr.mxu0 0.0
    %899 = vmatpush2.msra.mxu0 0.0
    %900 = vmatprep.subr.mxu0 0.0
    %901 = vmatpush2.msra.mxu0 0.0
    %902 = vmatprep.subr.mxu0 0.0
    %903 = vmatpush2.msra.mxu0 0.0
    %904 = vmatprep.subr.mxu0 0.0
    %905 = vmatpush2.msra.mxu0 0.0
    %906 = vmatprep.subr.mxu0 0.0
    %907 = vmatpush2.msra.mxu0 0.0
    %908 = vmatprep.subr.mxu0 0.0
    %909 = vmatpush2.msra.mxu0 0.0
    %910 = vmatprep.subr.mxu0 0.0
    %911 = vmatpush2.msra.mxu0 0.0
    %912 = vmatprep.subr.mxu0 0.0
    %913 = vmatpush2.msra.mxu0 0.0
    %914 = vmatprep.subr.mxu0 0.0
    %915 = vmatpush2.msra.mxu0 0.0
    %916 = vmatprep.mubr.f32.mxu0 0.0
    %917 = vmatmul.mubr.f32.gmra.mxu0 0.0
    %v918 = vpop.f32.mrf.mxu0
    %v919 = vadd.f32 0.0, %v918
    %v920 = vpop.f32.mrf.mxu0
    %v921 = vadd.f32 0.0, %v920
    %922 = vdwg.mxu0
    %923 = vmatprep.subr.mxu0 %v851
    %924 = vmatpush1.msra.mxu0 %v850
    %925 = vmatprep.subr.mxu0 %v847
    %926 = vmatpush1.msra.mxu0 %v846
    %927 = vmatprep.subr.mxu0 %v843
    %928 = vmatpush1.msra.mxu0 %v842
    %929 = vmatprep.subr.mxu0 %v839
    %930 = vmatpush1.msra.mxu0 %v838
    %931 = vmatprep.subr.mxu0 %v835
    %932 = vmatpush1.msra.mxu0 %v834
    %933 = vmatprep.subr.mxu0 %v831
    %934 = vmatpush1.msra.mxu0 %v830
    %935 = vmatprep.subr.mxu0 %v827
    %936 = vmatpush1.msra.mxu0 %v826
    %937 = vmatprep.subr.mxu0 %v823
    %938 = vmatpush1.msra.mxu0 %v822
    %939 = vmatprep.subr.mxu0 %v819
    %940 = vmatpush1.msra.mxu0 %v818
    %941 = vmatprep.subr.mxu0 %v815
    %942 = vmatpush1.msra.mxu0 %v814
    %943 = vmatprep.subr.mxu0 %v811
    %944 = vmatpush1.msra.mxu0 %v810
    %945 = vmatprep.subr.mxu0 %v807
    %946 = vmatpush1.msra.mxu0 %v806
    %947 = vmatprep.subr.mxu0 %v803
    %948 = vmatpush1.msra.mxu0 %v802
    %949 = vmatprep.subr.mxu0 %v799
    %950 = vmatpush1.msra.mxu0 %v798
    %951 = vmatprep.subr.mxu0 %v795
    %952 = vmatpush1.msra.mxu0 %v794
    %953 = vmatprep.subr.mxu0 %v791
    %954 = vmatpush1.msra.mxu0 %v790
    %955 = vmatprep.subr.mxu0 0.0
    %956 = vmatpush2.msra.mxu0 0.0
    %957 = vmatprep.subr.mxu0 0.0
    %958 = vmatpush2.msra.mxu0 0.0
    %959 = vmatprep.subr.mxu0 0.0
    %960 = vmatpush2.msra.mxu0 0.0
    %961 = vmatprep.subr.mxu0 0.0
    %962 = vmatpush2.msra.mxu0 0.0
    %963 = vmatprep.subr.mxu0 0.0
    %964 = vmatpush2.msra.mxu0 0.0
    %965 = vmatprep.subr.mxu0 0.0
    %966 = vmatpush2.msra.mxu0 0.0
    %967 = vmatprep.subr.mxu0 0.0
    %968 = vmatpush2.msra.mxu0 0.0
    %969 = vmatprep.subr.mxu0 0.0
    %970 = vmatpush2.msra.mxu0 0.0
    %971 = vmatprep.subr.mxu0 0.0
    %972 = vmatpush2.msra.mxu0 0.0
    %973 = vmatprep.subr.mxu0 0.0
    %974 = vmatpush2.msra.mxu0 0.0
    %975 = vmatprep.subr.mxu0 0.0
    %976 = vmatpush2.msra.mxu0 0.0
    %977 = vmatprep.subr.mxu0 0.0
    %978 = vmatpush2.msra.mxu0 0.0
    %979 = vmatprep.subr.mxu0 0.0
    %980 = vmatpush2.msra.mxu0 0.0
    %981 = vmatprep.subr.mxu0 0.0
    %982 = vmatpush2.msra.mxu0 0.0
    %983 = vmatprep.subr.mxu0 0.0
    %984 = vmatpush2.msra.mxu0 0.0
    %985 = vmatprep.subr.mxu0 0.0
    %986 = vmatpush2.msra.mxu0 0.0
    %987 = vmatprep.mubr.f32.mxu0 0.0
    %988 = vmatmul.mubr.f32.gmra.mxu0 0.0
    %v989 = vpop.f32.mrf.mxu0
    %v990 = vadd.f32 0.0, %v989
    %v991 = vpop.f32.mrf.mxu0
    %v992 = vadd.f32 0.0, %v991
    %993 = vdwg.mxu0
    %v994 = vadd.f32 %v784, %v919
    %v995 = vadd.f32 %v785, %v921
    %v996 = vadd.f32 %v786, %v990
    %v997 = vadd.f32 %v787, %v992
    %v998 = vxor.u32 %v994, 2147483648
    %v999 = vxor.u32 %v995, 2147483648
    %v1000 = vxor.u32 %v996, 2147483648
    %v1001 = vmul.f32 %v998, 1.442695
    %v1002 = vpow.pop %v1001
    %v1003 = vmul.f32 %v999, 1.442695
    %v1004 = vpow.pop %v1003
    %v1005 = vmul.f32 %v1000, 1.442695
    %v1006 = vpow.pop %v1005
    %v1007 = vadd.f32 %v1002, 1.0
    %v1008 = vadd.f32 %v1004, 1.0
    %v1009 = vadd.f32 %v1006, 1.0
    %v1010 = vrcp.pop %v1007
    %v1011 = vmul.f32 1.0, %v1010
    %v1012 = vrcp.pop %v1008
    %v1013 = vmul.f32 1.0, %v1012
    %v1014 = vrcp.pop %v1009
    %v1015 = vmul.f32 1.0, %v1014
    %v1016 = vtanh.pop %v997
    %v1017 = vmul.f32 %v1013, 0.0
    %v1018 = vmul.f32 %v1011, %v1016
    %v1019 = vadd.f32 %v1017, %v1018
    %v1020 = vtanh.pop %v1019
    %v1021 = vmul.f32 %v1015, %v1020
    %s1022 = scalar_lea.vmem [#allocation2], 32
    %v1023 = vld [vmem:[%s1022] sm:$0xff]
    %v1024 = vld [vmem:[%s1022 + $0x8] sm:$0xff]
    %v1025 = vld [vmem:[%s1022 + $0x10] sm:$0xff]
    %v1026 = vld [vmem:[%s1022 + $0x18] sm:$0xff]
    %1027 = vmatprep.subr.mxu0 %v849
    %1028 = vmatpush1.msra.mxu0 %v848
    %1029 = vmatprep.subr.mxu0 %v845
    %1030 = vmatpush1.msra.mxu0 %v844
    %1031 = vmatprep.subr.mxu0 %v841
    %1032 = vmatpush1.msra.mxu0 %v840
    %1033 = vmatprep.subr.mxu0 %v837
    %1034 = vmatpush1.msra.mxu0 %v836
    %1035 = vmatprep.subr.mxu0 %v833
    %1036 = vmatpush1.msra.mxu0 %v832
    %1037 = vmatprep.subr.mxu0 %v829
    %1038 = vmatpush1.msra.mxu0 %v828
    %1039 = vmatprep.subr.mxu0 %v825
    %1040 = vmatpush1.msra.mxu0 %v824
    %1041 = vmatprep.subr.mxu0 %v821
    %1042 = vmatpush1.msra.mxu0 %v820
    %1043 = vmatprep.subr.mxu0 %v817
    %1044 = vmatpush1.msra.mxu0 %v816
    %1045 = vmatprep.subr.mxu0 %v813
    %1046 = vmatpush1.msra.mxu0 %v812
    %1047 = vmatprep.subr.mxu0 %v809
    %1048 = vmatpush1.msra.mxu0 %v808
    %1049 = vmatprep.subr.mxu0 %v805
    %1050 = vmatpush1.msra.mxu0 %v804
    %1051 = vmatprep.subr.mxu0 %v801
    %1052 = vmatpush1.msra.mxu0 %v800
    %1053 = vmatprep.subr.mxu0 %v797
    %1054 = vmatpush1.msra.mxu0 %v796
    %1055 = vmatprep.subr.mxu0 %v793
    %1056 = vmatpush1.msra.mxu0 %v792
    %1057 = vmatprep.subr.mxu0 %v789
    %1058 = vmatpush1.msra.mxu0 %v788
    %1059 = vmatprep.subr.mxu0 0.0
    %1060 = vmatpush2.msra.mxu0 0.0
    %1061 = vmatprep.subr.mxu0 0.0
    %1062 = vmatpush2.msra.mxu0 0.0
    %1063 = vmatprep.subr.mxu0 0.0
    %1064 = vmatpush2.msra.mxu0 0.0
    %1065 = vmatprep.subr.mxu0 0.0
    %1066 = vmatpush2.msra.mxu0 0.0
    %1067 = vmatprep.subr.mxu0 0.0
    %1068 = vmatpush2.msra.mxu0 0.0
    %1069 = vmatprep.subr.mxu0 0.0
    %1070 = vmatpush2.msra.mxu0 0.0
    %1071 = vmatprep.subr.mxu0 0.0
    %1072 = vmatpush2.msra.mxu0 0.0
    %1073 = vmatprep.subr.mxu0 0.0
    %1074 = vmatpush2.msra.mxu0 0.0
    %1075 = vmatprep.subr.mxu0 0.0
    %1076 = vmatpush2.msra.mxu0 0.0
    %1077 = vmatprep.subr.mxu0 0.0
    %1078 = vmatpush2.msra.mxu0 0.0
    %1079 = vmatprep.subr.mxu0 0.0
    %1080 = vmatpush2.msra.mxu0 0.0
    %1081 = vmatprep.subr.mxu0 0.0
    %1082 = vmatpush2.msra.mxu0 0.0
    %1083 = vmatprep.subr.mxu0 0.0
    %1084 = vmatpush2.msra.mxu0 0.0
    %1085 = vmatprep.subr.mxu0 0.0
    %1086 = vmatpush2.msra.mxu0 0.0
    %1087 = vmatprep.subr.mxu0 0.0
    %1088 = vmatpush2.msra.mxu0 0.0
    %1089 = vmatprep.subr.mxu0 0.0
    %1090 = vmatpush2.msra.mxu0 0.0
    %1091 = vmatprep.mubr.f32.mxu0 0.0
    %1092 = vmatmul.mubr.f32.gmra.mxu0 %v1021
    %v1093 = vpop.f32.mrf.mxu0
    %v1094 = vadd.f32 0.0, %v1093
    %v1095 = vpop.f32.mrf.mxu0
    %v1096 = vadd.f32 0.0, %v1095
    %1097 = vdwg.mxu0
    %1098 = vmatprep.subr.mxu0 %v851
    %1099 = vmatpush1.msra.mxu0 %v850
    %1100 = vmatprep.subr.mxu0 %v847
    %1101 = vmatpush1.msra.mxu0 %v846
    %1102 = vmatprep.subr.mxu0 %v843
    %1103 = vmatpush1.msra.mxu0 %v842
    %1104 = vmatprep.subr.mxu0 %v839
    %1105 = vmatpush1.msra.mxu0 %v838
    %1106 = vmatprep.subr.mxu0 %v835
    %1107 = vmatpush1.msra.mxu0 %v834
    %1108 = vmatprep.subr.mxu0 %v831
    %1109 = vmatpush1.msra.mxu0 %v830
    %1110 = vmatprep.subr.mxu0 %v827
    %1111 = vmatpush1.msra.mxu0 %v826
    %1112 = vmatprep.subr.mxu0 %v823
    %1113 = vmatpush1.msra.mxu0 %v822
    %1114 = vmatprep.subr.mxu0 %v819
    %1115 = vmatpush1.msra.mxu0 %v818
    %1116 = vmatprep.subr.mxu0 %v815
    %1117 = vmatpush1.msra.mxu0 %v814
    %1118 = vmatprep.subr.mxu0 %v811
    %1119 = vmatpush1.msra.mxu0 %v810
    %1120 = vmatprep.subr.mxu0 %v807
    %1121 = vmatpush1.msra.mxu0 %v806
    %1122 = vmatprep.subr.mxu0 %v803
    %1123 = vmatpush1.msra.mxu0 %v802
    %1124 = vmatprep.subr.mxu0 %v799
    %1125 = vmatpush1.msra.mxu0 %v798
    %1126 = vmatprep.subr.mxu0 %v795
    %1127 = vmatpush1.msra.mxu0 %v794
    %1128 = vmatprep.subr.mxu0 %v791
    %1129 = vmatpush1.msra.mxu0 %v790
    %1130 = vmatprep.subr.mxu0 0.0
    %1131 = vmatpush2.msra.mxu0 0.0
    %1132 = vmatprep.subr.mxu0 0.0
    %1133 = vmatpush2.msra.mxu0 0.0
    %1134 = vmatprep.subr.mxu0 0.0
    %1135 = vmatpush2.msra.mxu0 0.0
    %1136 = vmatprep.subr.mxu0 0.0
    %1137 = vmatpush2.msra.mxu0 0.0
    %1138 = vmatprep.subr.mxu0 0.0
    %1139 = vmatpush2.msra.mxu0 0.0
    %1140 = vmatprep.subr.mxu0 0.0
    %1141 = vmatpush2.msra.mxu0 0.0
    %1142 = vmatprep.subr.mxu0 0.0
    %1143 = vmatpush2.msra.mxu0 0.0
    %1144 = vmatprep.subr.mxu0 0.0
    %1145 = vmatpush2.msra.mxu0 0.0
    %1146 = vmatprep.subr.mxu0 0.0
    %1147 = vmatpush2.msra.mxu0 0.0
    %1148 = vmatprep.subr.mxu0 0.0
    %1149 = vmatpush2.msra.mxu0 0.0
    %1150 = vmatprep.subr.mxu0 0.0
    %1151 = vmatpush2.msra.mxu0 0.0
    %1152 = vmatprep.subr.mxu0 0.0
    %1153 = vmatpush2.msra.mxu0 0.0
    %1154 = vmatprep.subr.mxu0 0.0
    %1155 = vmatpush2.msra.mxu0 0.0
    %1156 = vmatprep.subr.mxu0 0.0
    %1157 = vmatpush2.msra.mxu0 0.0
    %1158 = vmatprep.subr.mxu0 0.0
    %1159 = vmatpush2.msra.mxu0 0.0
    %1160 = vmatprep.subr.mxu0 0.0
    %1161 = vmatpush2.msra.mxu0 0.0
    %1162 = vmatprep.mubr.f32.mxu0 0.0
    %1163 = vmatmul.mubr.f32.gmra.mxu0 %v1021
    %v1164 = vpop.f32.mrf.mxu0
    %v1165 = vadd.f32 0.0, %v1164
    %v1166 = vpop.f32.mrf.mxu0
    %v1167 = vadd.f32 0.0, %v1166
    %1168 = vdwg.mxu0
    %v1169 = vadd.f32 %v1023, %v1094
    %v1170 = vadd.f32 %v1024, %v1096
    %v1171 = vadd.f32 %v1025, %v1165
    %v1172 = vadd.f32 %v1026, %v1167
    %v1173 = vxor.u32 %v1169, 2147483648
    %v1174 = vxor.u32 %v1170, 2147483648
    %v1175 = vxor.u32 %v1171, 2147483648
    %v1176 = vmul.f32 %v1173, 1.442695
    %v1177 = vpow.pop %v1176
    %v1178 = vmul.f32 %v1174, 1.442695
    %v1179 = vpow.pop %v1178
    %v1180 = vmul.f32 %v1175, 1.442695
    %v1181 = vpow.pop %v1180
    %v1182 = vadd.f32 %v1177, 1.0
    %v1183 = vadd.f32 %v1179, 1.0
    %v1184 = vadd.f32 %v1181, 1.0
    %v1185 = vrcp.pop %v1182
    %v1186 = vmul.f32 1.0, %v1185
    %v1187 = vrcp.pop %v1183
    %v1188 = vmul.f32 1.0, %v1187
    %v1189 = vrcp.pop %v1184
    %v1190 = vmul.f32 1.0, %v1189
    %v1191 = vtanh.pop %v1172
    %v1192 = vmul.f32 %v1188, %v1019
    %v1193 = vmul.f32 %v1186, %v1191
    %v1194 = vadd.f32 %v1192, %v1193
    %v1195 = vtanh.pop %v1194
    %v1196 = vmul.f32 %v1190, %v1195
    %s1197 = scalar_lea.vmem [#allocation2], 64
    %v1198 = vld [vmem:[%s1197] sm:$0xff]
    %v1199 = vld [vmem:[%s1197 + $0x8] sm:$0xff]
    %v1200 = vld [vmem:[%s1197 + $0x10] sm:$0xff]
    %v1201 = vld [vmem:[%s1197 + $0x18] sm:$0xff]
    %1202 = vmatprep.subr.mxu0 %v849
    %1203 = vmatpush1.msra.mxu0 %v848
    %1204 = vmatprep.subr.mxu0 %v845
    %1205 = vmatpush1.msra.mxu0 %v844
    %1206 = vmatprep.subr.mxu0 %v841
    %1207 = vmatpush1.msra.mxu0 %v840
    %1208 = vmatprep.subr.mxu0 %v837
    %1209 = vmatpush1.msra.mxu0 %v836
    %1210 = vmatprep.subr.mxu0 %v833
    %1211 = vmatpush1.msra.mxu0 %v832
    %1212 = vmatprep.subr.mxu0 %v829
    %1213 = vmatpush1.msra.mxu0 %v828
    %1214 = vmatprep.subr.mxu0 %v825
    %1215 = vmatpush1.msra.mxu0 %v824
    %1216 = vmatprep.subr.mxu0 %v821
    %1217 = vmatpush1.msra.mxu0 %v820
    %1218 = vmatprep.subr.mxu0 %v817
    %1219 = vmatpush1.msra.mxu0 %v816
    %1220 = vmatprep.subr.mxu0 %v813
    %1221 = vmatpush1.msra.mxu0 %v812
    %1222 = vmatprep.subr.mxu0 %v809
    %1223 = vmatpush1.msra.mxu0 %v808
    %1224 = vmatprep.subr.mxu0 %v805
    %1225 = vmatpush1.msra.mxu0 %v804
    %1226 = vmatprep.subr.mxu0 %v801
    %1227 = vmatpush1.msra.mxu0 %v800
    %1228 = vmatprep.subr.mxu0 %v797
    %1229 = vmatpush1.msra.mxu0 %v796
    %1230 = vmatprep.subr.mxu0 %v793
    %1231 = vmatpush1.msra.mxu0 %v792
    %1232 = vmatprep.subr.mxu0 %v789
    %1233 = vmatpush1.msra.mxu0 %v788
    %1234 = vmatprep.subr.mxu0 0.0
    %1235 = vmatpush2.msra.mxu0 0.0
    %1236 = vmatprep.subr.mxu0 0.0
    %1237 = vmatpush2.msra.mxu0 0.0
    %1238 = vmatprep.subr.mxu0 0.0
    %1239 = vmatpush2.msra.mxu0 0.0
    %1240 = vmatprep.subr.mxu0 0.0
    %1241 = vmatpush2.msra.mxu0 0.0
    %1242 = vmatprep.subr.mxu0 0.0
    %1243 = vmatpush2.msra.mxu0 0.0
    %1244 = vmatprep.subr.mxu0 0.0
    %1245 = vmatpush2.msra.mxu0 0.0
    %1246 = vmatprep.subr.mxu0 0.0
    %1247 = vmatpush2.msra.mxu0 0.0
    %1248 = vmatprep.subr.mxu0 0.0
    %1249 = vmatpush2.msra.mxu0 0.0
    %1250 = vmatprep.subr.mxu0 0.0
    %1251 = vmatpush2.msra.mxu0 0.0
    %1252 = vmatprep.subr.mxu0 0.0
    %1253 = vmatpush2.msra.mxu0 0.0
    %1254 = vmatprep.subr.mxu0 0.0
    %1255 = vmatpush2.msra.mxu0 0.0
    %1256 = vmatprep.subr.mxu0 0.0
    %1257 = vmatpush2.msra.mxu0 0.0
    %1258 = vmatprep.subr.mxu0 0.0
    %1259 = vmatpush2.msra.mxu0 0.0
    %1260 = vmatprep.subr.mxu0 0.0
    %1261 = vmatpush2.msra.mxu0 0.0
    %1262 = vmatprep.subr.mxu0 0.0
    %1263 = vmatpush2.msra.mxu0 0.0
    %1264 = vmatprep.subr.mxu0 0.0
    %1265 = vmatpush2.msra.mxu0 0.0
    %1266 = vmatprep.mubr.f32.mxu0 0.0
    %1267 = vmatmul.mubr.f32.gmra.mxu0 %v1196
    %v1268 = vpop.f32.mrf.mxu0
    %v1269 = vadd.f32 0.0, %v1268
    %v1270 = vpop.f32.mrf.mxu0
    %v1271 = vadd.f32 0.0, %v1270
    %1272 = vdwg.mxu0
    %1273 = vmatprep.subr.mxu0 %v851
    %1274 = vmatpush1.msra.mxu0 %v850
    %1275 = vmatprep.subr.mxu0 %v847
    %1276 = vmatpush1.msra.mxu0 %v846
    %1277 = vmatprep.subr.mxu0 %v843
    %1278 = vmatpush1.msra.mxu0 %v842
    %1279 = vmatprep.subr.mxu0 %v839
    %1280 = vmatpush1.msra.mxu0 %v838
    %1281 = vmatprep.subr.mxu0 %v835
    %1282 = vmatpush1.msra.mxu0 %v834
    %1283 = vmatprep.subr.mxu0 %v831
    %1284 = vmatpush1.msra.mxu0 %v830
    %1285 = vmatprep.subr.mxu0 %v827
    %1286 = vmatpush1.msra.mxu0 %v826
    %1287 = vmatprep.subr.mxu0 %v823
    %1288 = vmatpush1.msra.mxu0 %v822
    %1289 = vmatprep.subr.mxu0 %v819
    %1290 = vmatpush1.msra.mxu0 %v818
    %1291 = vmatprep.subr.mxu0 %v815
    %1292 = vmatpush1.msra.mxu0 %v814
    %1293 = vmatprep.subr.mxu0 %v811
    %1294 = vmatpush1.msra.mxu0 %v810
    %1295 = vmatprep.subr.mxu0 %v807
    %1296 = vmatpush1.msra.mxu0 %v806
    %1297 = vmatprep.subr.mxu0 %v803
    %1298 = vmatpush1.msra.mxu0 %v802
    %1299 = vmatprep.subr.mxu0 %v799
    %1300 = vmatpush1.msra.mxu0 %v798
    %1301 = vmatprep.subr.mxu0 %v795
    %1302 = vmatpush1.msra.mxu0 %v794
    %1303 = vmatprep.subr.mxu0 %v791
    %1304 = vmatpush1.msra.mxu0 %v790
    %1305 = vmatprep.subr.mxu0 0.0
    %1306 = vmatpush2.msra.mxu0 0.0
    %1307 = vmatprep.subr.mxu0 0.0
    %1308 = vmatpush2.msra.mxu0 0.0
    %1309 = vmatprep.subr.mxu0 0.0
    %1310 = vmatpush2.msra.mxu0 0.0
    %1311 = vmatprep.subr.mxu0 0.0
    %1312 = vmatpush2.msra.mxu0 0.0
    %1313 = vmatprep.subr.mxu0 0.0
    %1314 = vmatpush2.msra.mxu0 0.0
    %1315 = vmatprep.subr.mxu0 0.0
    %1316 = vmatpush2.msra.mxu0 0.0
    %1317 = vmatprep.subr.mxu0 0.0
    %1318 = vmatpush2.msra.mxu0 0.0
    %1319 = vmatprep.subr.mxu0 0.0
    %1320 = vmatpush2.msra.mxu0 0.0
    %1321 = vmatprep.subr.mxu0 0.0
    %1322 = vmatpush2.msra.mxu0 0.0
    %1323 = vmatprep.subr.mxu0 0.0
    %1324 = vmatpush2.msra.mxu0 0.0
    %1325 = vmatprep.subr.mxu0 0.0
    %1326 = vmatpush2.msra.mxu0 0.0
    %1327 = vmatprep.subr.mxu0 0.0
    %1328 = vmatpush2.msra.mxu0 0.0
    %1329 = vmatprep.subr.mxu0 0.0
    %1330 = vmatpush2.msra.mxu0 0.0
    %1331 = vmatprep.subr.mxu0 0.0
    %1332 = vmatpush2.msra.mxu0 0.0
    %1333 = vmatprep.subr.mxu0 0.0
    %1334 = vmatpush2.msra.mxu0 0.0
    %1335 = vmatprep.subr.mxu0 0.0
    %1336 = vmatpush2.msra.mxu0 0.0
    %1337 = vmatprep.mubr.f32.mxu0 0.0
    %1338 = vmatmul.mubr.f32.gmra.mxu0 %v1196
    %v1339 = vpop.f32.mrf.mxu0
    %v1340 = vadd.f32 0.0, %v1339
    %v1341 = vpop.f32.mrf.mxu0
    %v1342 = vadd.f32 0.0, %v1341
    %1343 = vdwg.mxu0
    %v1344 = vadd.f32 %v1198, %v1269
    %v1345 = vadd.f32 %v1199, %v1271
    %v1346 = vadd.f32 %v1200, %v1340
    %v1347 = vadd.f32 %v1201, %v1342
    %v1348 = vxor.u32 %v1344, 2147483648
    %v1349 = vxor.u32 %v1345, 2147483648
    %v1350 = vxor.u32 %v1346, 2147483648
    %v1351 = vmul.f32 %v1348, 1.442695
    %v1352 = vpow.pop %v1351
    %v1353 = vmul.f32 %v1349, 1.442695
    %v1354 = vpow.pop %v1353
    %v1355 = vmul.f32 %v1350, 1.442695
    %v1356 = vpow.pop %v1355
    %v1357 = vadd.f32 %v1352, 1.0
    %v1358 = vadd.f32 %v1354, 1.0
    %v1359 = vadd.f32 %v1356, 1.0
    %v1360 = vrcp.pop %v1357
    %v1361 = vmul.f32 1.0, %v1360
    %v1362 = vrcp.pop %v1358
    %v1363 = vmul.f32 1.0, %v1362
    %v1364 = vrcp.pop %v1359
    %v1365 = vmul.f32 1.0, %v1364
    %v1366 = vtanh.pop %v1347
    %v1367 = vmul.f32 %v1363, %v1194
    %v1368 = vmul.f32 %v1361, %v1366
    %v1369 = vadd.f32 %v1367, %v1368
    %v1370 = vtanh.pop %v1369
    %v1371 = vmul.f32 %v1365, %v1370
    %s1372 = scalar_lea.vmem [#allocation2], 96
    %v1373 = vld [vmem:[%s1372] sm:$0xff]
    %v1374 = vld [vmem:[%s1372 + $0x8] sm:$0xff]
    %v1375 = vld [vmem:[%s1372 + $0x10] sm:$0xff]
    %v1376 = vld [vmem:[%s1372 + $0x18] sm:$0xff]
    %1377 = vmatprep.subr.mxu0 %v849
    %1378 = vmatpush1.msra.mxu0 %v848
    %1379 = vmatprep.subr.mxu0 %v845
    %1380 = vmatpush1.msra.mxu0 %v844
    %1381 = vmatprep.subr.mxu0 %v841
    %1382 = vmatpush1.msra.mxu0 %v840
    %1383 = vmatprep.subr.mxu0 %v837
    %1384 = vmatpush1.msra.mxu0 %v836
    %1385 = vmatprep.subr.mxu0 %v833
    %1386 = vmatpush1.msra.mxu0 %v832
    %1387 = vmatprep.subr.mxu0 %v829
    %1388 = vmatpush1.msra.mxu0 %v828
    %1389 = vmatprep.subr.mxu0 %v825
    %1390 = vmatpush1.msra.mxu0 %v824
    %1391 = vmatprep.subr.mxu0 %v821
    %1392 = vmatpush1.msra.mxu0 %v820
    %1393 = vmatprep.subr.mxu0 %v817
    %1394 = vmatpush1.msra.mxu0 %v816
    %1395 = vmatprep.subr.mxu0 %v813
    %1396 = vmatpush1.msra.mxu0 %v812
    %1397 = vmatprep.subr.mxu0 %v809
    %1398 = vmatpush1.msra.mxu0 %v808
    %1399 = vmatprep.subr.mxu0 %v805
    %1400 = vmatpush1.msra.mxu0 %v804
    %1401 = vmatprep.subr.mxu0 %v801
    %1402 = vmatpush1.msra.mxu0 %v800
    %1403 = vmatprep.subr.mxu0 %v797
    %1404 = vmatpush1.msra.mxu0 %v796
    %1405 = vmatprep.subr.mxu0 %v793
    %1406 = vmatpush1.msra.mxu0 %v792
    %1407 = vmatprep.subr.mxu0 %v789
    %1408 = vmatpush1.msra.mxu0 %v788
    %1409 = vmatprep.subr.mxu0 0.0
    %1410 = vmatpush2.msra.mxu0 0.0
    %1411 = vmatprep.subr.mxu0 0.0
    %1412 = vmatpush2.msra.mxu0 0.0
    %1413 = vmatprep.subr.mxu0 0.0
    %1414 = vmatpush2.msra.mxu0 0.0
    %1415 = vmatprep.subr.mxu0 0.0
    %1416 = vmatpush2.msra.mxu0 0.0
    %1417 = vmatprep.subr.mxu0 0.0
    %1418 = vmatpush2.msra.mxu0 0.0
    %1419 = vmatprep.subr.mxu0 0.0
    %1420 = vmatpush2.msra.mxu0 0.0
    %1421 = vmatprep.subr.mxu0 0.0
    %1422 = vmatpush2.msra.mxu0 0.0
    %1423 = vmatprep.subr.mxu0 0.0
    %1424 = vmatpush2.msra.mxu0 0.0
    %1425 = vmatprep.subr.mxu0 0.0
    %1426 = vmatpush2.msra.mxu0 0.0
    %1427 = vmatprep.subr.mxu0 0.0
    %1428 = vmatpush2.msra.mxu0 0.0
    %1429 = vmatprep.subr.mxu0 0.0
    %1430 = vmatpush2.msra.mxu0 0.0
    %1431 = vmatprep.subr.mxu0 0.0
    %1432 = vmatpush2.msra.mxu0 0.0
    %1433 = vmatprep.subr.mxu0 0.0
    %1434 = vmatpush2.msra.mxu0 0.0
    %1435 = vmatprep.subr.mxu0 0.0
    %1436 = vmatpush2.msra.mxu0 0.0
    %1437 = vmatprep.subr.mxu0 0.0
    %1438 = vmatpush2.msra.mxu0 0.0
    %1439 = vmatprep.subr.mxu0 0.0
    %1440 = vmatpush2.msra.mxu0 0.0
    %1441 = vmatprep.mubr.f32.mxu0 0.0
    %1442 = vmatmul.mubr.f32.gmra.mxu0 %v1371
    %v1443 = vpop.f32.mrf.mxu0
    %v1444 = vadd.f32 0.0, %v1443
    %v1445 = vpop.f32.mrf.mxu0
    %v1446 = vadd.f32 0.0, %v1445
    %1447 = vdwg.mxu0
    %1448 = vmatprep.subr.mxu0 %v851
    %1449 = vmatpush1.msra.mxu0 %v850
    %1450 = vmatprep.subr.mxu0 %v847
    %1451 = vmatpush1.msra.mxu0 %v846
    %1452 = vmatprep.subr.mxu0 %v843
    %1453 = vmatpush1.msra.mxu0 %v842
    %1454 = vmatprep.subr.mxu0 %v839
    %1455 = vmatpush1.msra.mxu0 %v838
    %1456 = vmatprep.subr.mxu0 %v835
    %1457 = vmatpush1.msra.mxu0 %v834
    %1458 = vmatprep.subr.mxu0 %v831
    %1459 = vmatpush1.msra.mxu0 %v830
    %1460 = vmatprep.subr.mxu0 %v827
    %1461 = vmatpush1.msra.mxu0 %v826
    %1462 = vmatprep.subr.mxu0 %v823
    %1463 = vmatpush1.msra.mxu0 %v822
    %1464 = vmatprep.subr.mxu0 %v819
    %1465 = vmatpush1.msra.mxu0 %v818
    %1466 = vmatprep.subr.mxu0 %v815
    %1467 = vmatpush1.msra.mxu0 %v814
    %1468 = vmatprep.subr.mxu0 %v811
    %1469 = vmatpush1.msra.mxu0 %v810
    %1470 = vmatprep.subr.mxu0 %v807
    %1471 = vmatpush1.msra.mxu0 %v806
    %1472 = vmatprep.subr.mxu0 %v803
    %1473 = vmatpush1.msra.mxu0 %v802
    %1474 = vmatprep.subr.mxu0 %v799
    %1475 = vmatpush1.msra.mxu0 %v798
    %1476 = vmatprep.subr.mxu0 %v795
    %1477 = vmatpush1.msra.mxu0 %v794
    %1478 = vmatprep.subr.mxu0 %v791
    %1479 = vmatpush1.msra.mxu0 %v790
    %1480 = vmatprep.subr.mxu0 0.0
    %1481 = vmatpush2.msra.mxu0 0.0
    %1482 = vmatprep.subr.mxu0 0.0
    %1483 = vmatpush2.msra.mxu0 0.0
    %1484 = vmatprep.subr.mxu0 0.0
    %1485 = vmatpush2.msra.mxu0 0.0
    %1486 = vmatprep.subr.mxu0 0.0
    %1487 = vmatpush2.msra.mxu0 0.0
    %1488 = vmatprep.subr.mxu0 0.0
    %1489 = vmatpush2.msra.mxu0 0.0
    %1490 = vmatprep.subr.mxu0 0.0
    %1491 = vmatpush2.msra.mxu0 0.0
    %1492 = vmatprep.subr.mxu0 0.0
    %1493 = vmatpush2.msra.mxu0 0.0
    %1494 = vmatprep.subr.mxu0 0.0
    %1495 = vmatpush2.msra.mxu0 0.0
    %1496 = vmatprep.subr.mxu0 0.0
    %1497 = vmatpush2.msra.mxu0 0.0
    %1498 = vmatprep.subr.mxu0 0.0
    %1499 = vmatpush2.msra.mxu0 0.0
    %1500 = vmatprep.subr.mxu0 0.0
    %1501 = vmatpush2.msra.mxu0 0.0
    %1502 = vmatprep.subr.mxu0 0.0
    %1503 = vmatpush2.msra.mxu0 0.0
    %1504 = vmatprep.subr.mxu0 0.0
    %1505 = vmatpush2.msra.mxu0 0.0
    %1506 = vmatprep.subr.mxu0 0.0
    %1507 = vmatpush2.msra.mxu0 0.0
    %1508 = vmatprep.subr.mxu0 0.0
    %1509 = vmatpush2.msra.mxu0 0.0
    %1510 = vmatprep.subr.mxu0 0.0
    %1511 = vmatpush2.msra.mxu0 0.0
    %1512 = vmatprep.mubr.f32.mxu0 0.0
    %1513 = vmatmul.mubr.f32.gmra.mxu0 %v1371
    %v1514 = vpop.f32.mrf.mxu0
    %v1515 = vadd.f32 0.0, %v1514
    %v1516 = vpop.f32.mrf.mxu0
    %v1517 = vadd.f32 0.0, %v1516
    %1518 = vdwg.mxu0
    %v1519 = vadd.f32 %v1373, %v1444
    %v1520 = vadd.f32 %v1374, %v1446
    %v1521 = vadd.f32 %v1375, %v1515
    %v1522 = vadd.f32 %v1376, %v1517
    %v1523 = vxor.u32 %v1519, 2147483648
    %v1524 = vxor.u32 %v1520, 2147483648
    %v1525 = vxor.u32 %v1521, 2147483648
    %v1526 = vmul.f32 %v1523, 1.442695
    %v1527 = vpow.pop %v1526
    %v1528 = vmul.f32 %v1524, 1.442695
    %v1529 = vpow.pop %v1528
    %v1530 = vmul.f32 %v1525, 1.442695
    %v1531 = vpow.pop %v1530
    %v1532 = vadd.f32 %v1527, 1.0
    %v1533 = vadd.f32 %v1529, 1.0
    %v1534 = vadd.f32 %v1531, 1.0
    %v1535 = vrcp.pop %v1532
    %v1536 = vmul.f32 1.0, %v1535
    %v1537 = vrcp.pop %v1533
    %v1538 = vmul.f32 1.0, %v1537
    %v1539 = vrcp.pop %v1534
    %v1540 = vmul.f32 1.0, %v1539
    %v1541 = vtanh.pop %v1522
    %v1542 = vmul.f32 %v1538, %v1369
    %v1543 = vmul.f32 %v1536, %v1541
    %v1544 = vadd.f32 %v1542, %v1543
    %v1545 = vtanh.pop %v1544
    %v1546 = vmul.f32 %v1540, %v1545
    %s1547 = scalar_lea.vmem [#allocation2], 128
    %v1548 = vld [vmem:[%s1547] sm:$0xff]
    %v1549 = vld [vmem:[%s1547 + $0x8] sm:$0xff]
    %v1550 = vld [vmem:[%s1547 + $0x10] sm:$0xff]
    %v1551 = vld [vmem:[%s1547 + $0x18] sm:$0xff]
    %1552 = vmatprep.subr.mxu0 %v849
    %1553 = vmatpush1.msra.mxu0 %v848
    %1554 = vmatprep.subr.mxu0 %v845
    %1555 = vmatpush1.msra.mxu0 %v844
    %1556 = vmatprep.subr.mxu0 %v841
    %1557 = vmatpush1.msra.mxu0 %v840
    %1558 = vmatprep.subr.mxu0 %v837
    %1559 = vmatpush1.msra.mxu0 %v836
    %1560 = vmatprep.subr.mxu0 %v833
    %1561 = vmatpush1.msra.mxu0 %v832
    %1562 = vmatprep.subr.mxu0 %v829
    %1563 = vmatpush1.msra.mxu0 %v828
    %1564 = vmatprep.subr.mxu0 %v825
    %1565 = vmatpush1.msra.mxu0 %v824
    %1566 = vmatprep.subr.mxu0 %v821
    %1567 = vmatpush1.msra.mxu0 %v820
    %1568 = vmatprep.subr.mxu0 %v817
    %1569 = vmatpush1.msra.mxu0 %v816
    %1570 = vmatprep.subr.mxu0 %v813
    %1571 = vmatpush1.msra.mxu0 %v812
    %1572 = vmatprep.subr.mxu0 %v809
    %1573 = vmatpush1.msra.mxu0 %v808
    %1574 = vmatprep.subr.mxu0 %v805
    %1575 = vmatpush1.msra.mxu0 %v804
    %1576 = vmatprep.subr.mxu0 %v801
    %1577 = vmatpush1.msra.mxu0 %v800
    %1578 = vmatprep.subr.mxu0 %v797
    %1579 = vmatpush1.msra.mxu0 %v796
    %1580 = vmatprep.subr.mxu0 %v793
    %1581 = vmatpush1.msra.mxu0 %v792
    %1582 = vmatprep.subr.mxu0 %v789
    %1583 = vmatpush1.msra.mxu0 %v788
    %1584 = vmatprep.subr.mxu0 0.0
    %1585 = vmatpush2.msra.mxu0 0.0
    %1586 = vmatprep.subr.mxu0 0.0
    %1587 = vmatpush2.msra.mxu0 0.0
    %1588 = vmatprep.subr.mxu0 0.0
    %1589 = vmatpush2.msra.mxu0 0.0
    %1590 = vmatprep.subr.mxu0 0.0
    %1591 = vmatpush2.msra.mxu0 0.0
    %1592 = vmatprep.subr.mxu0 0.0
    %1593 = vmatpush2.msra.mxu0 0.0
    %1594 = vmatprep.subr.mxu0 0.0
    %1595 = vmatpush2.msra.mxu0 0.0
    %1596 = vmatprep.subr.mxu0 0.0
    %1597 = vmatpush2.msra.mxu0 0.0
    %1598 = vmatprep.subr.mxu0 0.0
    %1599 = vmatpush2.msra.mxu0 0.0
    %1600 = vmatprep.subr.mxu0 0.0
    %1601 = vmatpush2.msra.mxu0 0.0
    %1602 = vmatprep.subr.mxu0 0.0
    %1603 = vmatpush2.msra.mxu0 0.0
    %1604 = vmatprep.subr.mxu0 0.0
    %1605 = vmatpush2.msra.mxu0 0.0
    %1606 = vmatprep.subr.mxu0 0.0
    %1607 = vmatpush2.msra.mxu0 0.0
    %1608 = vmatprep.subr.mxu0 0.0
    %1609 = vmatpush2.msra.mxu0 0.0
    %1610 = vmatprep.subr.mxu0 0.0
    %1611 = vmatpush2.msra.mxu0 0.0
    %1612 = vmatprep.subr.mxu0 0.0
    %1613 = vmatpush2.msra.mxu0 0.0
    %1614 = vmatprep.subr.mxu0 0.0
    %1615 = vmatpush2.msra.mxu0 0.0
    %1616 = vmatprep.mubr.f32.mxu0 0.0
    %1617 = vmatmul.mubr.f32.gmra.mxu0 %v1546
    %v1618 = vpop.f32.mrf.mxu0
    %v1619 = vadd.f32 0.0, %v1618
    %v1620 = vpop.f32.mrf.mxu0
    %v1621 = vadd.f32 0.0, %v1620
    %1622 = vdwg.mxu0
    %1623 = vmatprep.subr.mxu0 %v851
    %1624 = vmatpush1.msra.mxu0 %v850
    %1625 = vmatprep.subr.mxu0 %v847
    %1626 = vmatpush1.msra.mxu0 %v846
    %1627 = vmatprep.subr.mxu0 %v843
    %1628 = vmatpush1.msra.mxu0 %v842
    %1629 = vmatprep.subr.mxu0 %v839
    %1630 = vmatpush1.msra.mxu0 %v838
    %1631 = vmatprep.subr.mxu0 %v835
    %1632 = vmatpush1.msra.mxu0 %v834
    %1633 = vmatprep.subr.mxu0 %v831
    %1634 = vmatpush1.msra.mxu0 %v830
    %1635 = vmatprep.subr.mxu0 %v827
    %1636 = vmatpush1.msra.mxu0 %v826
    %1637 = vmatprep.subr.mxu0 %v823
    %1638 = vmatpush1.msra.mxu0 %v822
    %1639 = vmatprep.subr.mxu0 %v819
    %1640 = vmatpush1.msra.mxu0 %v818
    %1641 = vmatprep.subr.mxu0 %v815
    %1642 = vmatpush1.msra.mxu0 %v814
    %1643 = vmatprep.subr.mxu0 %v811
    %1644 = vmatpush1.msra.mxu0 %v810
    %1645 = vmatprep.subr.mxu0 %v807
    %1646 = vmatpush1.msra.mxu0 %v806
    %1647 = vmatprep.subr.mxu0 %v803
    %1648 = vmatpush1.msra.mxu0 %v802
    %1649 = vmatprep.subr.mxu0 %v799
    %1650 = vmatpush1.msra.mxu0 %v798
    %1651 = vmatprep.subr.mxu0 %v795
    %1652 = vmatpush1.msra.mxu0 %v794
    %1653 = vmatprep.subr.mxu0 %v791
    %1654 = vmatpush1.msra.mxu0 %v790
    %1655 = vmatprep.subr.mxu0 0.0
    %1656 = vmatpush2.msra.mxu0 0.0
    %1657 = vmatprep.subr.mxu0 0.0
    %1658 = vmatpush2.msra.mxu0 0.0
    %1659 = vmatprep.subr.mxu0 0.0
    %1660 = vmatpush2.msra.mxu0 0.0
    %1661 = vmatprep.subr.mxu0 0.0
    %1662 = vmatpush2.msra.mxu0 0.0
    %1663 = vmatprep.subr.mxu0 0.0
    %1664 = vmatpush2.msra.mxu0 0.0
    %1665 = vmatprep.subr.mxu0 0.0
    %1666 = vmatpush2.msra.mxu0 0.0
    %1667 = vmatprep.subr.mxu0 0.0
    %1668 = vmatpush2.msra.mxu0 0.0
    %1669 = vmatprep.subr.mxu0 0.0
    %1670 = vmatpush2.msra.mxu0 0.0
    %1671 = vmatprep.subr.mxu0 0.0
    %1672 = vmatpush2.msra.mxu0 0.0
    %1673 = vmatprep.subr.mxu0 0.0
    %1674 = vmatpush2.msra.mxu0 0.0
    %1675 = vmatprep.subr.mxu0 0.0
    %1676 = vmatpush2.msra.mxu0 0.0
    %1677 = vmatprep.subr.mxu0 0.0
    %1678 = vmatpush2.msra.mxu0 0.0
    %1679 = vmatprep.subr.mxu0 0.0
    %1680 = vmatpush2.msra.mxu0 0.0
    %1681 = vmatprep.subr.mxu0 0.0
    %1682 = vmatpush2.msra.mxu0 0.0
    %1683 = vmatprep.subr.mxu0 0.0
    %1684 = vmatpush2.msra.mxu0 0.0
    %1685 = vmatprep.subr.mxu0 0.0
    %1686 = vmatpush2.msra.mxu0 0.0
    %1687 = vmatprep.mubr.f32.mxu0 0.0
    %1688 = vmatmul.mubr.f32.gmra.mxu0 %v1546
    %v1689 = vpop.f32.mrf.mxu0
    %v1690 = vadd.f32 0.0, %v1689
    %v1691 = vpop.f32.mrf.mxu0
    %v1692 = vadd.f32 0.0, %v1691
    %1693 = vdwg.mxu0
    %v1694 = vadd.f32 %v1548, %v1619
    %v1695 = vadd.f32 %v1549, %v1621
    %v1696 = vadd.f32 %v1550, %v1690
    %v1697 = vadd.f32 %v1551, %v1692
    %v1698 = vxor.u32 %v1694, 2147483648
    %v1699 = vxor.u32 %v1695, 2147483648
    %v1700 = vxor.u32 %v1696, 2147483648
    %v1701 = vmul.f32 %v1698, 1.442695
    %v1702 = vpow.pop %v1701
    %v1703 = vmul.f32 %v1699, 1.442695
    %v1704 = vpow.pop %v1703
    %v1705 = vmul.f32 %v1700, 1.442695
    %v1706 = vpow.pop %v1705
    %v1707 = vadd.f32 %v1702, 1.0
    %v1708 = vadd.f32 %v1704, 1.0
    %v1709 = vadd.f32 %v1706, 1.0
    %v1710 = vrcp.pop %v1707
    %v1711 = vmul.f32 1.0, %v1710
    %v1712 = vrcp.pop %v1708
    %v1713 = vmul.f32 1.0, %v1712
    %v1714 = vrcp.pop %v1709
    %v1715 = vmul.f32 1.0, %v1714
    %v1716 = vtanh.pop %v1697
    %v1717 = vmul.f32 %v1713, %v1544
    %v1718 = vmul.f32 %v1711, %v1716
    %v1719 = vadd.f32 %v1717, %v1718
    %v1720 = vtanh.pop %v1719
    %v1721 = vmul.f32 %v1715, %v1720
    %s1722 = scalar_lea.vmem [#allocation2], 160
    %v1723 = vld [vmem:[%s1722] sm:$0xff]
    %v1724 = vld [vmem:[%s1722 + $0x8] sm:$0xff]
    %v1725 = vld [vmem:[%s1722 + $0x10] sm:$0xff]
    %v1726 = vld [vmem:[%s1722 + $0x18] sm:$0xff]
    %1727 = vmatprep.subr.mxu0 %v849
    %1728 = vmatpush1.msra.mxu0 %v848
    %1729 = vmatprep.subr.mxu0 %v845
    %1730 = vmatpush1.msra.mxu0 %v844
    %1731 = vmatprep.subr.mxu0 %v841
    %1732 = vmatpush1.msra.mxu0 %v840
    %1733 = vmatprep.subr.mxu0 %v837
    %1734 = vmatpush1.msra.mxu0 %v836
    %1735 = vmatprep.subr.mxu0 %v833
    %1736 = vmatpush1.msra.mxu0 %v832
    %1737 = vmatprep.subr.mxu0 %v829
    %1738 = vmatpush1.msra.mxu0 %v828
    %1739 = vmatprep.subr.mxu0 %v825
    %1740 = vmatpush1.msra.mxu0 %v824
    %1741 = vmatprep.subr.mxu0 %v821
    %1742 = vmatpush1.msra.mxu0 %v820
    %1743 = vmatprep.subr.mxu0 %v817
    %1744 = vmatpush1.msra.mxu0 %v816
    %1745 = vmatprep.subr.mxu0 %v813
    %1746 = vmatpush1.msra.mxu0 %v812
    %1747 = vmatprep.subr.mxu0 %v809
    %1748 = vmatpush1.msra.mxu0 %v808
    %1749 = vmatprep.subr.mxu0 %v805
    %1750 = vmatpush1.msra.mxu0 %v804
    %1751 = vmatprep.subr.mxu0 %v801
    %1752 = vmatpush1.msra.mxu0 %v800
    %1753 = vmatprep.subr.mxu0 %v797
    %1754 = vmatpush1.msra.mxu0 %v796
    %1755 = vmatprep.subr.mxu0 %v793
    %1756 = vmatpush1.msra.mxu0 %v792
    %1757 = vmatprep.subr.mxu0 %v789
    %1758 = vmatpush1.msra.mxu0 %v788
    %1759 = vmatprep.subr.mxu0 0.0
    %1760 = vmatpush2.msra.mxu0 0.0
    %1761 = vmatprep.subr.mxu0 0.0
    %1762 = vmatpush2.msra.mxu0 0.0
    %1763 = vmatprep.subr.mxu0 0.0
    %1764 = vmatpush2.msra.mxu0 0.0
    %1765 = vmatprep.subr.mxu0 0.0
    %1766 = vmatpush2.msra.mxu0 0.0
    %1767 = vmatprep.subr.mxu0 0.0
    %1768 = vmatpush2.msra.mxu0 0.0
    %1769 = vmatprep.subr.mxu0 0.0
    %1770 = vmatpush2.msra.mxu0 0.0
    %1771 = vmatprep.subr.mxu0 0.0
    %1772 = vmatpush2.msra.mxu0 0.0
    %1773 = vmatprep.subr.mxu0 0.0
    %1774 = vmatpush2.msra.mxu0 0.0
    %1775 = vmatprep.subr.mxu0 0.0
    %1776 = vmatpush2.msra.mxu0 0.0
    %1777 = vmatprep.subr.mxu0 0.0
    %1778 = vmatpush2.msra.mxu0 0.0
    %1779 = vmatprep.subr.mxu0 0.0
    %1780 = vmatpush2.msra.mxu0 0.0
    %1781 = vmatprep.subr.mxu0 0.0
    %1782 = vmatpush2.msra.mxu0 0.0
    %1783 = vmatprep.subr.mxu0 0.0
    %1784 = vmatpush2.msra.mxu0 0.0
    %1785 = vmatprep.subr.mxu0 0.0
    %1786 = vmatpush2.msra.mxu0 0.0
    %1787 = vmatprep.subr.mxu0 0.0
    %1788 = vmatpush2.msra.mxu0 0.0
    %1789 = vmatprep.subr.mxu0 0.0
    %1790 = vmatpush2.msra.mxu0 0.0
    %1791 = vmatprep.mubr.f32.mxu0 0.0
    %1792 = vmatmul.mubr.f32.gmra.mxu0 %v1721
    %v1793 = vpop.f32.mrf.mxu0
    %v1794 = vadd.f32 0.0, %v1793
    %v1795 = vpop.f32.mrf.mxu0
    %v1796 = vadd.f32 0.0, %v1795
    %1797 = vdwg.mxu0
    %1798 = vmatprep.subr.mxu0 %v851
    %1799 = vmatpush1.msra.mxu0 %v850
    %1800 = vmatprep.subr.mxu0 %v847
    %1801 = vmatpush1.msra.mxu0 %v846
    %1802 = vmatprep.subr.mxu0 %v843
    %1803 = vmatpush1.msra.mxu0 %v842
    %1804 = vmatprep.subr.mxu0 %v839
    %1805 = vmatpush1.msra.mxu0 %v838
    %1806 = vmatprep.subr.mxu0 %v835
    %1807 = vmatpush1.msra.mxu0 %v834
    %1808 = vmatprep.subr.mxu0 %v831
    %1809 = vmatpush1.msra.mxu0 %v830
    %1810 = vmatprep.subr.mxu0 %v827
    %1811 = vmatpush1.msra.mxu0 %v826
    %1812 = vmatprep.subr.mxu0 %v823
    %1813 = vmatpush1.msra.mxu0 %v822
    %1814 = vmatprep.subr.mxu0 %v819
    %1815 = vmatpush1.msra.mxu0 %v818
    %1816 = vmatprep.subr.mxu0 %v815
    %1817 = vmatpush1.msra.mxu0 %v814
    %1818 = vmatprep.subr.mxu0 %v811
    %1819 = vmatpush1.msra.mxu0 %v810
    %1820 = vmatprep.subr.mxu0 %v807
    %1821 = vmatpush1.msra.mxu0 %v806
    %1822 = vmatprep.subr.mxu0 %v803
    %1823 = vmatpush1.msra.mxu0 %v802
    %1824 = vmatprep.subr.mxu0 %v799
    %1825 = vmatpush1.msra.mxu0 %v798
    %1826 = vmatprep.subr.mxu0 %v795
    %1827 = vmatpush1.msra.mxu0 %v794
    %1828 = vmatprep.subr.mxu0 %v791
    %1829 = vmatpush1.msra.mxu0 %v790
    %1830 = vmatprep.subr.mxu0 0.0
    %1831 = vmatpush2.msra.mxu0 0.0
    %1832 = vmatprep.subr.mxu0 0.0
    %1833 = vmatpush2.msra.mxu0 0.0
    %1834 = vmatprep.subr.mxu0 0.0
    %1835 = vmatpush2.msra.mxu0 0.0
    %1836 = vmatprep.subr.mxu0 0.0
    %1837 = vmatpush2.msra.mxu0 0.0
    %1838 = vmatprep.subr.mxu0 0.0
    %1839 = vmatpush2.msra.mxu0 0.0
    %1840 = vmatprep.subr.mxu0 0.0
    %1841 = vmatpush2.msra.mxu0 0.0
    %1842 = vmatprep.subr.mxu0 0.0
    %1843 = vmatpush2.msra.mxu0 0.0
    %1844 = vmatprep.subr.mxu0 0.0
    %1845 = vmatpush2.msra.mxu0 0.0
    %1846 = vmatprep.subr.mxu0 0.0
    %1847 = vmatpush2.msra.mxu0 0.0
    %1848 = vmatprep.subr.mxu0 0.0
    %1849 = vmatpush2.msra.mxu0 0.0
    %1850 = vmatprep.subr.mxu0 0.0
    %1851 = vmatpush2.msra.mxu0 0.0
    %1852 = vmatprep.subr.mxu0 0.0
    %1853 = vmatpush2.msra.mxu0 0.0
    %1854 = vmatprep.subr.mxu0 0.0
    %1855 = vmatpush2.msra.mxu0 0.0
    %1856 = vmatprep.subr.mxu0 0.0
    %1857 = vmatpush2.msra.mxu0 0.0
    %1858 = vmatprep.subr.mxu0 0.0
    %1859 = vmatpush2.msra.mxu0 0.0
    %1860 = vmatprep.subr.mxu0 0.0
    %1861 = vmatpush2.msra.mxu0 0.0
    %1862 = vmatprep.mubr.f32.mxu0 0.0
    %1863 = vmatmul.mubr.f32.gmra.mxu0 %v1721
    %v1864 = vpop.f32.mrf.mxu0
    %v1865 = vadd.f32 0.0, %v1864
    %v1866 = vpop.f32.mrf.mxu0
    %v1867 = vadd.f32 0.0, %v1866
    %1868 = vdwg.mxu0
    %v1869 = vadd.f32 %v1723, %v1794
    %v1870 = vadd.f32 %v1724, %v1796
    %v1871 = vadd.f32 %v1725, %v1865
    %v1872 = vadd.f32 %v1726, %v1867
    %v1873 = vxor.u32 %v1869, 2147483648
    %v1874 = vxor.u32 %v1870, 2147483648
    %v1875 = vxor.u32 %v1871, 2147483648
    %v1876 = vmul.f32 %v1873, 1.442695
    %v1877 = vpow.pop %v1876
    %v1878 = vmul.f32 %v1874, 1.442695
    %v1879 = vpow.pop %v1878
    %v1880 = vmul.f32 %v1875, 1.442695
    %v1881 = vpow.pop %v1880
    %v1882 = vadd.f32 %v1877, 1.0
    %v1883 = vadd.f32 %v1879, 1.0
    %v1884 = vadd.f32 %v1881, 1.0
    %v1885 = vrcp.pop %v1882
    %v1886 = vmul.f32 1.0, %v1885
    %v1887 = vrcp.pop %v1883
    %v1888 = vmul.f32 1.0, %v1887
    %v1889 = vrcp.pop %v1884
    %v1890 = vmul.f32 1.0, %v1889
    %v1891 = vtanh.pop %v1872
    %v1892 = vmul.f32 %v1888, %v1719
    %v1893 = vmul.f32 %v1886, %v1891
    %v1894 = vadd.f32 %v1892, %v1893
    %v1895 = vtanh.pop %v1894
    %v1896 = vmul.f32 %v1890, %v1895
    %s1897 = scalar_lea.vmem [#allocation2], 192
    %v1898 = vld [vmem:[%s1897] sm:$0xff]
    %v1899 = vld [vmem:[%s1897 + $0x8] sm:$0xff]
    %v1900 = vld [vmem:[%s1897 + $0x10] sm:$0xff]
    %v1901 = vld [vmem:[%s1897 + $0x18] sm:$0xff]
    %1902 = vmatprep.subr.mxu0 %v849
    %1903 = vmatpush1.msra.mxu0 %v848
    %1904 = vmatprep.subr.mxu0 %v845
    %1905 = vmatpush1.msra.mxu0 %v844
    %1906 = vmatprep.subr.mxu0 %v841
    %1907 = vmatpush1.msra.mxu0 %v840
    %1908 = vmatprep.subr.mxu0 %v837
    %1909 = vmatpush1.msra.mxu0 %v836
    %1910 = vmatprep.subr.mxu0 %v833
    %1911 = vmatpush1.msra.mxu0 %v832
    %1912 = vmatprep.subr.mxu0 %v829
    %1913 = vmatpush1.msra.mxu0 %v828
    %1914 = vmatprep.subr.mxu0 %v825
    %1915 = vmatpush1.msra.mxu0 %v824
    %1916 = vmatprep.subr.mxu0 %v821
    %1917 = vmatpush1.msra.mxu0 %v820
    %1918 = vmatprep.subr.mxu0 %v817
    %1919 = vmatpush1.msra.mxu0 %v816
    %1920 = vmatprep.subr.mxu0 %v813
    %1921 = vmatpush1.msra.mxu0 %v812
    %1922 = vmatprep.subr.mxu0 %v809
    %1923 = vmatpush1.msra.mxu0 %v808
    %1924 = vmatprep.subr.mxu0 %v805
    %1925 = vmatpush1.msra.mxu0 %v804
    %1926 = vmatprep.subr.mxu0 %v801
    %1927 = vmatpush1.msra.mxu0 %v800
    %1928 = vmatprep.subr.mxu0 %v797
    %1929 = vmatpush1.msra.mxu0 %v796
    %1930 = vmatprep.subr.mxu0 %v793
    %1931 = vmatpush1.msra.mxu0 %v792
    %1932 = vmatprep.subr.mxu0 %v789
    %1933 = vmatpush1.msra.mxu0 %v788
    %1934 = vmatprep.subr.mxu0 0.0
    %1935 = vmatpush2.msra.mxu0 0.0
    %1936 = vmatprep.subr.mxu0 0.0
    %1937 = vmatpush2.msra.mxu0 0.0
    %1938 = vmatprep.subr.mxu0 0.0
    %1939 = vmatpush2.msra.mxu0 0.0
    %1940 = vmatprep.subr.mxu0 0.0
    %1941 = vmatpush2.msra.mxu0 0.0
    %1942 = vmatprep.subr.mxu0 0.0
    %1943 = vmatpush2.msra.mxu0 0.0
    %1944 = vmatprep.subr.mxu0 0.0
    %1945 = vmatpush2.msra.mxu0 0.0
    %1946 = vmatprep.subr.mxu0 0.0
    %1947 = vmatpush2.msra.mxu0 0.0
    %1948 = vmatprep.subr.mxu0 0.0
    %1949 = vmatpush2.msra.mxu0 0.0
    %1950 = vmatprep.subr.mxu0 0.0
    %1951 = vmatpush2.msra.mxu0 0.0
    %1952 = vmatprep.subr.mxu0 0.0
    %1953 = vmatpush2.msra.mxu0 0.0
    %1954 = vmatprep.subr.mxu0 0.0
    %1955 = vmatpush2.msra.mxu0 0.0
    %1956 = vmatprep.subr.mxu0 0.0
    %1957 = vmatpush2.msra.mxu0 0.0
    %1958 = vmatprep.subr.mxu0 0.0
    %1959 = vmatpush2.msra.mxu0 0.0
    %1960 = vmatprep.subr.mxu0 0.0
    %1961 = vmatpush2.msra.mxu0 0.0
    %1962 = vmatprep.subr.mxu0 0.0
    %1963 = vmatpush2.msra.mxu0 0.0
    %1964 = vmatprep.subr.mxu0 0.0
    %1965 = vmatpush2.msra.mxu0 0.0
    %1966 = vmatprep.mubr.f32.mxu0 0.0
    %1967 = vmatmul.mubr.f32.gmra.mxu0 %v1896
    %v1968 = vpop.f32.mrf.mxu0
    %v1969 = vadd.f32 0.0, %v1968
    %v1970 = vpop.f32.mrf.mxu0
    %v1971 = vadd.f32 0.0, %v1970
    %1972 = vdwg.mxu0
    %1973 = vmatprep.subr.mxu0 %v851
    %1974 = vmatpush1.msra.mxu0 %v850
    %1975 = vmatprep.subr.mxu0 %v847
    %1976 = vmatpush1.msra.mxu0 %v846
    %1977 = vmatprep.subr.mxu0 %v843
    %1978 = vmatpush1.msra.mxu0 %v842
    %1979 = vmatprep.subr.mxu0 %v839
    %1980 = vmatpush1.msra.mxu0 %v838
    %1981 = vmatprep.subr.mxu0 %v835
    %1982 = vmatpush1.msra.mxu0 %v834
    %1983 = vmatprep.subr.mxu0 %v831
    %1984 = vmatpush1.msra.mxu0 %v830
    %1985 = vmatprep.subr.mxu0 %v827
    %1986 = vmatpush1.msra.mxu0 %v826
    %1987 = vmatprep.subr.mxu0 %v823
    %1988 = vmatpush1.msra.mxu0 %v822
    %1989 = vmatprep.subr.mxu0 %v819
    %1990 = vmatpush1.msra.mxu0 %v818
    %1991 = vmatprep.subr.mxu0 %v815
    %1992 = vmatpush1.msra.mxu0 %v814
    %1993 = vmatprep.subr.mxu0 %v811
    %1994 = vmatpush1.msra.mxu0 %v810
    %1995 = vmatprep.subr.mxu0 %v807
    %1996 = vmatpush1.msra.mxu0 %v806
    %1997 = vmatprep.subr.mxu0 %v803
    %1998 = vmatpush1.msra.mxu0 %v802
    %1999 = vmatprep.subr.mxu0 %v799
    %2000 = vmatpush1.msra.mxu0 %v798
    %2001 = vmatprep.subr.mxu0 %v795
    %2002 = vmatpush1.msra.mxu0 %v794
    %2003 = vmatprep.subr.mxu0 %v791
    %2004 = vmatpush1.msra.mxu0 %v790
    %2005 = vmatprep.subr.mxu0 0.0
    %2006 = vmatpush2.msra.mxu0 0.0
    %2007 = vmatprep.subr.mxu0 0.0
    %2008 = vmatpush2.msra.mxu0 0.0
    %2009 = vmatprep.subr.mxu0 0.0
    %2010 = vmatpush2.msra.mxu0 0.0
    %2011 = vmatprep.subr.mxu0 0.0
    %2012 = vmatpush2.msra.mxu0 0.0
    %2013 = vmatprep.subr.mxu0 0.0
    %2014 = vmatpush2.msra.mxu0 0.0
    %2015 = vmatprep.subr.mxu0 0.0
    %2016 = vmatpush2.msra.mxu0 0.0
    %2017 = vmatprep.subr.mxu0 0.0
    %2018 = vmatpush2.msra.mxu0 0.0
    %2019 = vmatprep.subr.mxu0 0.0
    %2020 = vmatpush2.msra.mxu0 0.0
    %2021 = vmatprep.subr.mxu0 0.0
    %2022 = vmatpush2.msra.mxu0 0.0
    %2023 = vmatprep.subr.mxu0 0.0
    %2024 = vmatpush2.msra.mxu0 0.0
    %2025 = vmatprep.subr.mxu0 0.0
    %2026 = vmatpush2.msra.mxu0 0.0
    %2027 = vmatprep.subr.mxu0 0.0
    %2028 = vmatpush2.msra.mxu0 0.0
    %2029 = vmatprep.subr.mxu0 0.0
    %2030 = vmatpush2.msra.mxu0 0.0
    %2031 = vmatprep.subr.mxu0 0.0
    %2032 = vmatpush2.msra.mxu0 0.0
    %2033 = vmatprep.subr.mxu0 0.0
    %2034 = vmatpush2.msra.mxu0 0.0
    %2035 = vmatprep.subr.mxu0 0.0
    %2036 = vmatpush2.msra.mxu0 0.0
    %2037 = vmatprep.mubr.f32.mxu0 0.0
    %2038 = vmatmul.mubr.f32.gmra.mxu0 %v1896
    %v2039 = vpop.f32.mrf.mxu0
    %v2040 = vadd.f32 0.0, %v2039
    %v2041 = vpop.f32.mrf.mxu0
    %v2042 = vadd.f32 0.0, %v2041
    %2043 = vdwg.mxu0
    %v2044 = vadd.f32 %v1898, %v1969
    %v2045 = vadd.f32 %v1899, %v1971
    %v2046 = vadd.f32 %v1900, %v2040
    %v2047 = vadd.f32 %v1901, %v2042
    %v2048 = vxor.u32 %v2044, 2147483648
    %v2049 = vxor.u32 %v2045, 2147483648
    %v2050 = vxor.u32 %v2046, 2147483648
    %v2051 = vmul.f32 %v2048, 1.442695
    %v2052 = vpow.pop %v2051
    %v2053 = vmul.f32 %v2049, 1.442695
    %v2054 = vpow.pop %v2053
    %v2055 = vmul.f32 %v2050, 1.442695
    %v2056 = vpow.pop %v2055
    %v2057 = vadd.f32 %v2052, 1.0
    %v2058 = vadd.f32 %v2054, 1.0
    %v2059 = vadd.f32 %v2056, 1.0
    %v2060 = vrcp.pop %v2057
    %v2061 = vmul.f32 1.0, %v2060
    %v2062 = vrcp.pop %v2058
    %v2063 = vmul.f32 1.0, %v2062
    %v2064 = vrcp.pop %v2059
    %v2065 = vmul.f32 1.0, %v2064
    %v2066 = vtanh.pop %v2047
    %v2067 = vmul.f32 %v2063, %v1894
    %v2068 = vmul.f32 %v2061, %v2066
    %v2069 = vadd.f32 %v2067, %v2068
    %v2070 = vtanh.pop %v2069
    %v2071 = vmul.f32 %v2065, %v2070
    %s2072 = scalar_lea.vmem [#allocation2], 224
    %v2073 = vld [vmem:[%s2072] sm:$0xff]
    %v2074 = vld [vmem:[%s2072 + $0x8] sm:$0xff]
    %v2075 = vld [vmem:[%s2072 + $0x10] sm:$0xff]
    %v2076 = vld [vmem:[%s2072 + $0x18] sm:$0xff]
    %2077 = vmatprep.subr.mxu0 %v849
    %2078 = vmatpush1.msra.mxu0 %v848
    %2079 = vmatprep.subr.mxu0 %v845
    %2080 = vmatpush1.msra.mxu0 %v844
    %2081 = vmatprep.subr.mxu0 %v841
    %2082 = vmatpush1.msra.mxu0 %v840
    %2083 = vmatprep.subr.mxu0 %v837
    %2084 = vmatpush1.msra.mxu0 %v836
    %2085 = vmatprep.subr.mxu0 %v833
    %2086 = vmatpush1.msra.mxu0 %v832
    %2087 = vmatprep.subr.mxu0 %v829
    %2088 = vmatpush1.msra.mxu0 %v828
    %2089 = vmatprep.subr.mxu0 %v825
    %2090 = vmatpush1.msra.mxu0 %v824
    %2091 = vmatprep.subr.mxu0 %v821
    %2092 = vmatpush1.msra.mxu0 %v820
    %2093 = vmatprep.subr.mxu0 %v817
    %2094 = vmatpush1.msra.mxu0 %v816
    %2095 = vmatprep.subr.mxu0 %v813
    %2096 = vmatpush1.msra.mxu0 %v812
    %2097 = vmatprep.subr.mxu0 %v809
    %2098 = vmatpush1.msra.mxu0 %v808
    %2099 = vmatprep.subr.mxu0 %v805
    %2100 = vmatpush1.msra.mxu0 %v804
    %2101 = vmatprep.subr.mxu0 %v801
    %2102 = vmatpush1.msra.mxu0 %v800
    %2103 = vmatprep.subr.mxu0 %v797
    %2104 = vmatpush1.msra.mxu0 %v796
    %2105 = vmatprep.subr.mxu0 %v793
    %2106 = vmatpush1.msra.mxu0 %v792
    %2107 = vmatprep.subr.mxu0 %v789
    %2108 = vmatpush1.msra.mxu0 %v788
    %2109 = vmatprep.subr.mxu0 0.0
    %2110 = vmatpush2.msra.mxu0 0.0
    %2111 = vmatprep.subr.mxu0 0.0
    %2112 = vmatpush2.msra.mxu0 0.0
    %2113 = vmatprep.subr.mxu0 0.0
    %2114 = vmatpush2.msra.mxu0 0.0
    %2115 = vmatprep.subr.mxu0 0.0
    %2116 = vmatpush2.msra.mxu0 0.0
    %2117 = vmatprep.subr.mxu0 0.0
    %2118 = vmatpush2.msra.mxu0 0.0
    %2119 = vmatprep.subr.mxu0 0.0
    %2120 = vmatpush2.msra.mxu0 0.0
    %2121 = vmatprep.subr.mxu0 0.0
    %2122 = vmatpush2.msra.mxu0 0.0
    %2123 = vmatprep.subr.mxu0 0.0
    %2124 = vmatpush2.msra.mxu0 0.0
    %2125 = vmatprep.subr.mxu0 0.0
    %2126 = vmatpush2.msra.mxu0 0.0
    %2127 = vmatprep.subr.mxu0 0.0
    %2128 = vmatpush2.msra.mxu0 0.0
    %2129 = vmatprep.subr.mxu0 0.0
    %2130 = vmatpush2.msra.mxu0 0.0
    %2131 = vmatprep.subr.mxu0 0.0
    %2132 = vmatpush2.msra.mxu0 0.0
    %2133 = vmatprep.subr.mxu0 0.0
    %2134 = vmatpush2.msra.mxu0 0.0
    %2135 = vmatprep.subr.mxu0 0.0
    %2136 = vmatpush2.msra.mxu0 0.0
    %2137 = vmatprep.subr.mxu0 0.0
    %2138 = vmatpush2.msra.mxu0 0.0
    %2139 = vmatprep.subr.mxu0 0.0
    %2140 = vmatpush2.msra.mxu0 0.0
    %2141 = vmatprep.mubr.f32.mxu0 0.0
    %2142 = vmatmul.mubr.f32.gmra.mxu0 %v2071
    %v2143 = vpop.f32.mrf.mxu0
    %v2144 = vadd.f32 0.0, %v2143
    %v2145 = vpop.f32.mrf.mxu0
    %v2146 = vadd.f32 0.0, %v2145
    %2147 = vdwg.mxu0
    %2148 = vmatprep.subr.mxu0 %v851
    %2149 = vmatpush1.msra.mxu0 %v850
    %2150 = vmatprep.subr.mxu0 %v847
    %2151 = vmatpush1.msra.mxu0 %v846
    %2152 = vmatprep.subr.mxu0 %v843
    %2153 = vmatpush1.msra.mxu0 %v842
    %2154 = vmatprep.subr.mxu0 %v839
    %2155 = vmatpush1.msra.mxu0 %v838
    %2156 = vmatprep.subr.mxu0 %v835
    %2157 = vmatpush1.msra.mxu0 %v834
    %2158 = vmatprep.subr.mxu0 %v831
    %2159 = vmatpush1.msra.mxu0 %v830
    %2160 = vmatprep.subr.mxu0 %v827
    %2161 = vmatpush1.msra.mxu0 %v826
    %2162 = vmatprep.subr.mxu0 %v823
    %2163 = vmatpush1.msra.mxu0 %v822
    %2164 = vmatprep.subr.mxu0 %v819
    %2165 = vmatpush1.msra.mxu0 %v818
    %2166 = vmatprep.subr.mxu0 %v815
    %2167 = vmatpush1.msra.mxu0 %v814
    %2168 = vmatprep.subr.mxu0 %v811
    %2169 = vmatpush1.msra.mxu0 %v810
    %2170 = vmatprep.subr.mxu0 %v807
    %2171 = vmatpush1.msra.mxu0 %v806
    %2172 = vmatprep.subr.mxu0 %v803
    %2173 = vmatpush1.msra.mxu0 %v802
    %2174 = vmatprep.subr.mxu0 %v799
    %2175 = vmatpush1.msra.mxu0 %v798
    %2176 = vmatprep.subr.mxu0 %v795
    %2177 = vmatpush1.msra.mxu0 %v794
    %2178 = vmatprep.subr.mxu0 %v791
    %2179 = vmatpush1.msra.mxu0 %v790
    %2180 = vmatprep.subr.mxu0 0.0
    %2181 = vmatpush2.msra.mxu0 0.0
    %2182 = vmatprep.subr.mxu0 0.0
    %2183 = vmatpush2.msra.mxu0 0.0
    %2184 = vmatprep.subr.mxu0 0.0
    %2185 = vmatpush2.msra.mxu0 0.0
    %2186 = vmatprep.subr.mxu0 0.0
    %2187 = vmatpush2.msra.mxu0 0.0
    %2188 = vmatprep.subr.mxu0 0.0
    %2189 = vmatpush2.msra.mxu0 0.0
    %2190 = vmatprep.subr.mxu0 0.0
    %2191 = vmatpush2.msra.mxu0 0.0
    %2192 = vmatprep.subr.mxu0 0.0
    %2193 = vmatpush2.msra.mxu0 0.0
    %2194 = vmatprep.subr.mxu0 0.0
    %2195 = vmatpush2.msra.mxu0 0.0
    %2196 = vmatprep.subr.mxu0 0.0
    %2197 = vmatpush2.msra.mxu0 0.0
    %2198 = vmatprep.subr.mxu0 0.0
    %2199 = vmatpush2.msra.mxu0 0.0
    %2200 = vmatprep.subr.mxu0 0.0
    %2201 = vmatpush2.msra.mxu0 0.0
    %2202 = vmatprep.subr.mxu0 0.0
    %2203 = vmatpush2.msra.mxu0 0.0
    %2204 = vmatprep.subr.mxu0 0.0
    %2205 = vmatpush2.msra.mxu0 0.0
    %2206 = vmatprep.subr.mxu0 0.0
    %2207 = vmatpush2.msra.mxu0 0.0
    %2208 = vmatprep.subr.mxu0 0.0
    %2209 = vmatpush2.msra.mxu0 0.0
    %2210 = vmatprep.subr.mxu0 0.0
    %2211 = vmatpush2.msra.mxu0 0.0
    %2212 = vmatprep.mubr.f32.mxu0 0.0
    %2213 = vmatmul.mubr.f32.gmra.mxu0 %v2071
    %v2214 = vpop.f32.mrf.mxu0
    %v2215 = vadd.f32 0.0, %v2214
    %v2216 = vpop.f32.mrf.mxu0
    %v2217 = vadd.f32 0.0, %v2216
    %2218 = vdwg.mxu0
    %v2219 = vadd.f32 %v2073, %v2144
    %v2220 = vadd.f32 %v2074, %v2146
    %v2221 = vadd.f32 %v2075, %v2215
    %v2222 = vadd.f32 %v2076, %v2217
    %v2223 = vxor.u32 %v2219, 2147483648
    %v2224 = vxor.u32 %v2220, 2147483648
    %v2225 = vxor.u32 %v2221, 2147483648
    %v2226 = vmul.f32 %v2223, 1.442695
    %v2227 = vpow.pop %v2226
    %v2228 = vmul.f32 %v2224, 1.442695
    %v2229 = vpow.pop %v2228
    %v2230 = vmul.f32 %v2225, 1.442695
    %v2231 = vpow.pop %v2230
    %v2232 = vadd.f32 %v2227, 1.0
    %v2233 = vadd.f32 %v2229, 1.0
    %v2234 = vadd.f32 %v2231, 1.0
    %v2235 = vrcp.pop %v2232
    %v2236 = vmul.f32 1.0, %v2235
    %v2237 = vrcp.pop %v2233
    %v2238 = vmul.f32 1.0, %v2237
    %v2239 = vrcp.pop %v2234
    %v2240 = vmul.f32 1.0, %v2239
    %v2241 = vtanh.pop %v2222
    %v2242 = vmul.f32 %v2238, %v2069
    %v2243 = vmul.f32 %v2236, %v2241
    %v2244 = vadd.f32 %v2242, %v2243
    %v2245 = vtanh.pop %v2244
    %v2246 = vmul.f32 %v2240, %v2245
    %v2247 = vld [vmem:[%s4] sm:$0xff]
    %v2248 = vld [vmem:[%s5] sm:$0xff]
    %v2249 = vld [vmem:[%s5 + $0x8] sm:$0x3]
    %v2250 = vld [vmem:[%s6] sm:$0x1]
    %v2252 = vlaneseq
    %v2253 = vshrl.u32 %v2252, 7
    %v2254 = vsub.s32 0, %v2253
    %v2255 = vrot.slane %v2250, %v2254
    %vm2257 = vcmask 80896
    %v2259 = vsel %vm2257, %v2247, 0
    %vm2261 = vcmask 1041408
    %v2263 = vsel %vm2261, %v2249, 0
    %2265 = vmatprep.subr.mxu0 0.0
    %2266 = vmatpush1.msra.mxu0 0.0
    %2267 = vmatprep.subr.mxu0 0.0
    %2268 = vmatpush1.msra.mxu0 0.0
    %2269 = vmatprep.subr.mxu0 0.0
    %2270 = vmatpush1.msra.mxu0 0.0
    %2271 = vmatprep.subr.mxu0 0.0
    %2272 = vmatpush1.msra.mxu0 0.0
    %2273 = vmatprep.subr.mxu0 0.0
    %2274 = vmatpush1.msra.mxu0 0.0
    %2275 = vmatprep.subr.mxu0 0.0
    %2276 = vmatpush1.msra.mxu0 0.0
    %2277 = vmatprep.subr.mxu0 0.0
    %2278 = vmatpush1.msra.mxu0 0.0
    %2279 = vmatprep.subr.mxu0 0.0
    %2280 = vmatpush1.msra.mxu0 0.0
    %2281 = vmatprep.subr.mxu0 0.0
    %2282 = vmatpush1.msra.mxu0 0.0
    %2283 = vmatprep.subr.mxu0 0.0
    %2284 = vmatpush1.msra.mxu0 0.0
    %2285 = vmatprep.subr.mxu0 0.0
    %2286 = vmatpush1.msra.mxu0 0.0
    %2287 = vmatprep.subr.mxu0 0.0
    %2288 = vmatpush1.msra.mxu0 0.0
    %2289 = vmatprep.subr.mxu0 0.0
    %2290 = vmatpush1.msra.mxu0 0.0
    %2291 = vmatprep.subr.mxu0 0.0
    %2292 = vmatpush1.msra.mxu0 0.0
    %2293 = vmatprep.subr.mxu0 0.0
    %2294 = vmatpush1.msra.mxu0 %v2263
    %2295 = vmatprep.subr.mxu0 0.0
    %2296 = vmatpush1.msra.mxu0 %v2248
    %2297 = vmatprep.subr.mxu0 0.0
    %2298 = vmatpush2.msra.mxu0 0.0
    %2299 = vmatprep.subr.mxu0 0.0
    %2300 = vmatpush2.msra.mxu0 0.0
    %2301 = vmatprep.subr.mxu0 0.0
    %2302 = vmatpush2.msra.mxu0 0.0
    %2303 = vmatprep.subr.mxu0 0.0
    %2304 = vmatpush2.msra.mxu0 0.0
    %2305 = vmatprep.subr.mxu0 0.0
    %2306 = vmatpush2.msra.mxu0 0.0
    %2307 = vmatprep.subr.mxu0 0.0
    %2308 = vmatpush2.msra.mxu0 0.0
    %2309 = vmatprep.subr.mxu0 0.0
    %2310 = vmatpush2.msra.mxu0 0.0
    %2311 = vmatprep.subr.mxu0 0.0
    %2312 = vmatpush2.msra.mxu0 0.0
    %2313 = vmatprep.subr.mxu0 0.0
    %2314 = vmatpush2.msra.mxu0 0.0
    %2315 = vmatprep.subr.mxu0 0.0
    %2316 = vmatpush2.msra.mxu0 0.0
    %2317 = vmatprep.subr.mxu0 0.0
    %2318 = vmatpush2.msra.mxu0 0.0
    %2319 = vmatprep.subr.mxu0 0.0
    %2320 = vmatpush2.msra.mxu0 0.0
    %2321 = vmatprep.subr.mxu0 0.0
    %2322 = vmatpush2.msra.mxu0 0.0
    %2323 = vmatprep.subr.mxu0 0.0
    %2324 = vmatpush2.msra.mxu0 0.0
    %2325 = vmatprep.subr.mxu0 0.0
    %2326 = vmatpush2.msra.mxu0 0.0
    %2327 = vmatprep.subr.mxu0 0.0
    %2328 = vmatpush2.msra.mxu0 0.0
    %2329 = vmatprep.mubr.f32.mxu0 0.0
    %2330 = vmatmul.mubr.f32.gmra.mxu0 %v2259
    %v2331 = vpop.f32.mrf.mxu0
    %v2332 = vadd.f32 %v2255, %v2331
    %v2333 = vpop.f32.mrf.mxu0
    %2334 = vdwg.mxu0
    %v2335 = vmax.f32 %v2332, 0.0
    %v2336 = vld [vmem:[%s7] sm:$0xff]
    %v2337 = vld [vmem:[%s7 + $0x8] sm:$0xff]
    %v2338 = vld [vmem:[%s7 + $0x10] sm:$0xff]
    %v2339 = vld [vmem:[%s7 + $0x18] sm:$0xff]
    %v2340 = vld [vmem:[%s7 + $0x20] sm:$0xff]
    %v2341 = vld [vmem:[%s7 + $0x28] sm:$0xff]
    %v2342 = vld [vmem:[%s7 + $0x30] sm:$0xff]
    %v2343 = vld [vmem:[%s7 + $0x38] sm:$0xff]
    %v2344 = vld [vmem:[%s7 + $0x40] sm:$0xff]
    %v2345 = vld [vmem:[%s7 + $0x48] sm:$0xff]
    %v2346 = vld [vmem:[%s7 + $0x50] sm:$0xff]
    %v2347 = vld [vmem:[%s7 + $0x58] sm:$0xff]
    %v2348 = vld [vmem:[%s7 + $0x60] sm:$0xff]
    %v2349 = vld [vmem:[%s7 + $0x68] sm:$0xff]
    %v2350 = vld [vmem:[%s7 + $0x70] sm:$0xff]
    %v2351 = vld [vmem:[%s7 + $0x78] sm:$0xff]
    %v2352 = vld [vmem:[%s8] sm:$0xff]
    %v2353 = vld [vmem:[%s8 + $0x8] sm:$0xff]
    %v2354 = vld [vmem:[%s8 + $0x10] sm:$0xff]
    %v2355 = vld [vmem:[%s8 + $0x18] sm:$0xff]
    %v2356 = vld [vmem:[%s8 + $0x20] sm:$0xff]
    %v2357 = vld [vmem:[%s8 + $0x28] sm:$0xff]
    %v2358 = vld [vmem:[%s8 + $0x30] sm:$0xff]
    %v2359 = vld [vmem:[%s8 + $0x38] sm:$0xff]
    %v2360 = vld [vmem:[%s8 + $0x40] sm:$0xff]
    %v2361 = vld [vmem:[%s8 + $0x48] sm:$0xff]
    %v2362 = vld [vmem:[%s8 + $0x50] sm:$0xff]
    %v2363 = vld [vmem:[%s8 + $0x58] sm:$0xff]
    %v2364 = vld [vmem:[%s8 + $0x60] sm:$0xff]
    %v2365 = vld [vmem:[%s8 + $0x68] sm:$0xff]
    %v2366 = vld [vmem:[%s8 + $0x70] sm:$0xff]
    %v2367 = vld [vmem:[%s8 + $0x78] sm:$0xff]
    %2368 = vmatprep.subr.mxu0 0.0
    %2369 = vmatpush1.msra.mxu0 %v2367
    %2370 = vmatprep.subr.mxu0 0.0
    %2371 = vmatpush1.msra.mxu0 %v2366
    %2372 = vmatprep.subr.mxu0 0.0
    %2373 = vmatpush1.msra.mxu0 %v2365
    %2374 = vmatprep.subr.mxu0 0.0
    %2375 = vmatpush1.msra.mxu0 %v2364
    %2376 = vmatprep.subr.mxu0 0.0
    %2377 = vmatpush1.msra.mxu0 %v2363
    %2378 = vmatprep.subr.mxu0 0.0
    %2379 = vmatpush1.msra.mxu0 %v2362
    %2380 = vmatprep.subr.mxu0 0.0
    %2381 = vmatpush1.msra.mxu0 %v2361
    %2382 = vmatprep.subr.mxu0 0.0
    %2383 = vmatpush1.msra.mxu0 %v2360
    %2384 = vmatprep.subr.mxu0 0.0
    %2385 = vmatpush1.msra.mxu0 %v2359
    %2386 = vmatprep.subr.mxu0 0.0
    %2387 = vmatpush1.msra.mxu0 %v2358
    %2388 = vmatprep.subr.mxu0 0.0
    %2389 = vmatpush1.msra.mxu0 %v2357
    %2390 = vmatprep.subr.mxu0 0.0
    %2391 = vmatpush1.msra.mxu0 %v2356
    %2392 = vmatprep.subr.mxu0 0.0
    %2393 = vmatpush1.msra.mxu0 %v2355
    %2394 = vmatprep.subr.mxu0 0.0
    %2395 = vmatpush1.msra.mxu0 %v2354
    %2396 = vmatprep.subr.mxu0 0.0
    %2397 = vmatpush1.msra.mxu0 %v2353
    %2398 = vmatprep.subr.mxu0 0.0
    %2399 = vmatpush1.msra.mxu0 %v2352
    %2400 = vmatprep.subr.mxu0 0.0
    %2401 = vmatpush2.msra.mxu0 0.0
    %2402 = vmatprep.subr.mxu0 0.0
    %2403 = vmatpush2.msra.mxu0 0.0
    %2404 = vmatprep.subr.mxu0 0.0
    %2405 = vmatpush2.msra.mxu0 0.0
    %2406 = vmatprep.subr.mxu0 0.0
    %2407 = vmatpush2.msra.mxu0 0.0
    %2408 = vmatprep.subr.mxu0 0.0
    %2409 = vmatpush2.msra.mxu0 0.0
    %2410 = vmatprep.subr.mxu0 0.0
    %2411 = vmatpush2.msra.mxu0 0.0
    %2412 = vmatprep.subr.mxu0 0.0
    %2413 = vmatpush2.msra.mxu0 0.0
    %2414 = vmatprep.subr.mxu0 0.0
    %2415 = vmatpush2.msra.mxu0 0.0
    %2416 = vmatprep.subr.mxu0 0.0
    %2417 = vmatpush2.msra.mxu0 0.0
    %2418 = vmatprep.subr.mxu0 0.0
    %2419 = vmatpush2.msra.mxu0 0.0
    %2420 = vmatprep.subr.mxu0 0.0
    %2421 = vmatpush2.msra.mxu0 0.0
    %2422 = vmatprep.subr.mxu0 0.0
    %2423 = vmatpush2.msra.mxu0 0.0
    %2424 = vmatprep.subr.mxu0 0.0
    %2425 = vmatpush2.msra.mxu0 0.0
    %2426 = vmatprep.subr.mxu0 0.0
    %2427 = vmatpush2.msra.mxu0 0.0
    %2428 = vmatprep.subr.mxu0 0.0
    %2429 = vmatpush2.msra.mxu0 0.0
    %2430 = vmatprep.subr.mxu0 0.0
    %2431 = vmatpush2.msra.mxu0 0.0
    %2432 = vmatprep.mubr.f32.mxu0 0.0
    %2433 = vmatmul.mubr.f32.gmra.mxu0 %v2335
    %v2434 = vpop.f32.mrf.mxu0
    %v2435 = vadd.f32 0.0, %v2434
    %v2436 = vpop.f32.mrf.mxu0
    %2437 = vdwg.mxu0
    %2438 = vmatprep.subr.mxu0 0.0
    %2439 = vmatpush1.msra.mxu0 %v2351
    %2440 = vmatprep.subr.mxu0 0.0
    %2441 = vmatpush1.msra.mxu0 %v2350
    %2442 = vmatprep.subr.mxu0 0.0
    %2443 = vmatpush1.msra.mxu0 %v2349
    %2444 = vmatprep.subr.mxu0 0.0
    %2445 = vmatpush1.msra.mxu0 %v2348
    %2446 = vmatprep.subr.mxu0 0.0
    %2447 = vmatpush1.msra.mxu0 %v2347
    %2448 = vmatprep.subr.mxu0 0.0
    %2449 = vmatpush1.msra.mxu0 %v2346
    %2450 = vmatprep.subr.mxu0 0.0
    %2451 = vmatpush1.msra.mxu0 %v2345
    %2452 = vmatprep.subr.mxu0 0.0
    %2453 = vmatpush1.msra.mxu0 %v2344
    %2454 = vmatprep.subr.mxu0 0.0
    %2455 = vmatpush1.msra.mxu0 %v2343
    %2456 = vmatprep.subr.mxu0 0.0
    %2457 = vmatpush1.msra.mxu0 %v2342
    %2458 = vmatprep.subr.mxu0 0.0
    %2459 = vmatpush1.msra.mxu0 %v2341
    %2460 = vmatprep.subr.mxu0 0.0
    %2461 = vmatpush1.msra.mxu0 %v2340
    %2462 = vmatprep.subr.mxu0 0.0
    %2463 = vmatpush1.msra.mxu0 %v2339
    %2464 = vmatprep.subr.mxu0 0.0
    %2465 = vmatpush1.msra.mxu0 %v2338
    %2466 = vmatprep.subr.mxu0 0.0
    %2467 = vmatpush1.msra.mxu0 %v2337
    %2468 = vmatprep.subr.mxu0 0.0
    %2469 = vmatpush1.msra.mxu0 %v2336
    %2470 = vmatprep.subr.mxu0 0.0
    %2471 = vmatpush2.msra.mxu0 0.0
    %2472 = vmatprep.subr.mxu0 0.0
    %2473 = vmatpush2.msra.mxu0 0.0
    %2474 = vmatprep.subr.mxu0 0.0
    %2475 = vmatpush2.msra.mxu0 0.0
    %2476 = vmatprep.subr.mxu0 0.0
    %2477 = vmatpush2.msra.mxu0 0.0
    %2478 = vmatprep.subr.mxu0 0.0
    %2479 = vmatpush2.msra.mxu0 0.0
    %2480 = vmatprep.subr.mxu0 0.0
    %2481 = vmatpush2.msra.mxu0 0.0
    %2482 = vmatprep.subr.mxu0 0.0
    %2483 = vmatpush2.msra.mxu0 0.0
    %2484 = vmatprep.subr.mxu0 0.0
    %2485 = vmatpush2.msra.mxu0 0.0
    %2486 = vmatprep.subr.mxu0 0.0
    %2487 = vmatpush2.msra.mxu0 0.0
    %2488 = vmatprep.subr.mxu0 0.0
    %2489 = vmatpush2.msra.mxu0 0.0
    %2490 = vmatprep.subr.mxu0 0.0
    %2491 = vmatpush2.msra.mxu0 0.0
    %2492 = vmatprep.subr.mxu0 0.0
    %2493 = vmatpush2.msra.mxu0 0.0
    %2494 = vmatprep.subr.mxu0 0.0
    %2495 = vmatpush2.msra.mxu0 0.0
    %2496 = vmatprep.subr.mxu0 0.0
    %2497 = vmatpush2.msra.mxu0 0.0
    %2498 = vmatprep.subr.mxu0 0.0
    %2499 = vmatpush2.msra.mxu0 0.0
    %2500 = vmatprep.subr.mxu0 0.0
    %2501 = vmatpush2.msra.mxu0 0.0
    %2502 = vmatprep.mubr.f32.mxu0 0.0
    %2503 = vmatmul.mubr.f32.gmra.mxu0 %v2246
    %v2504 = vpop.f32.mrf.mxu0
    %v2505 = vadd.f32 %v2435, %v2504
    %v2506 = vpop.f32.mrf.mxu0
    %2507 = vdwg.mxu0
    %v2508 = vld [vmem:[%s9] sm:$0x1]
    %v2510 = vlaneseq
    %v2511 = vshrl.u32 %v2510, 7
    %v2512 = vsub.s32 0, %v2511
    %v2513 = vrot.slane %v2508, %v2512
    %v2515 = vadd.f32 %v2505, %v2513
    %2516 = vst.msk [vmem:[#allocation8] sm:$0xff] %vm2257, %v2515
    // Predicated region
    $region50: #{tpu_custom_call.1} parent=1 // pred_check
      _
    $region51: #{tpu_custom_call.1} parent=1 // pred_check_branch
      %2518 = sbr.rel (0) target = $region53
    $region52: #{tpu_custom_call.1} parent=1 // pred_region
      %s2520 = ssub.s32 128, 128
      %2521 = vsyncadd [#allocation5], %s2520
      %s2523 = sshll.u32 [#allocation8], 4
      %s2524 = int_to_ptr.vmem [resolvable:$true] %s2523
      %2526 = dma.vmem_to_hbm [thread:$0]  %s2524, 128, %s10, [#allocation5]
    $region53: #{tpu_custom_call.1} parent=1 // pred_fallthru
      _
    // Predicated region
    $region54: #{tpu_custom_call.1} parent=1 // pred_check
      _
    $region55: #{tpu_custom_call.1} parent=1 // pred_check_branch
      %2528 = sbr.rel (0) target = $region57
    $region56: #{tpu_custom_call.1} parent=1 // pred_region
      %2529 = dma.done [#allocation5], 128
    $region57: #{tpu_custom_call.1} parent=1 // pred_fallthru
      _
    %2530 = vsyncpa [#allocation4], 1
    %2531 = vsyncpa [#allocation7], 1
    %2532 = vsyncpa [#allocation5], 1

</llo_original>
